<compile_context>
chip_gen: v5e
topology: v5e:2x2
jax: 0.10.0
libtpu: 0.0.40
codegen_flags: <defaults>
</compile_context>

<pallas_src>
import numpy as np
import jax
import jax.numpy as jnp
from jax.experimental import pallas as pl
from jax.experimental.pallas import tpu as pltpu

NUM_HEADS = 8
LN_EPS = 1e-5  # PyTorch nn.LayerNorm default


# ----------------------------- in-kernel math ------------------------------

def _erf(x):
    # Abramowitz & Stegun 7.1.26 (max abs err ~1.5e-7) -> matches exact-GELU
    # (nn.GELU default) well within float32 noise, lowers cleanly in Mosaic.
    p = 0.3275911
    a1, a2, a3, a4, a5 = (0.254829592, -0.284496736, 1.421413741,
                          -1.453152027, 1.061405429)
    ax = jnp.abs(x)
    t = 1.0 / (1.0 + p * ax)
    poly = ((((a5 * t + a4) * t + a3) * t + a2) * t + a1) * t
    y = 1.0 - poly * jnp.exp(-ax * ax)
    return jnp.where(x >= 0, y, -y)


def _gelu_exact(x):
    return 0.5 * x * (1.0 + _erf(x * 0.7071067811865476))


def _layernorm(x, gamma, beta):
    mean = jnp.mean(x, axis=-1, keepdims=True)
    var = jnp.mean((x - mean) ** 2, axis=-1, keepdims=True)
    return (x - mean) * jax.lax.rsqrt(var + LN_EPS) * gamma + beta


# --------------------------------- kernel ----------------------------------

def _prosody_kernel(
    feat_ref, pos_ref,
    w_feat_ref, b_feat_ref,
    ln1_g_ref, ln1_b_ref, w1_ref, b1_ref, w2_ref, b2_ref,
    ln2_g_ref, ln2_b_ref,
    wqkv_ref, bqkv_ref, wo_ref, bo_ref,
    out_ref,
    qkv_ref, ctx_ref,
):
    f32 = jnp.float32
    bf16 = jnp.bfloat16

    N = feat_ref.shape[0]            # Bt * S (flattened rows in this block)
    D = wo_ref.shape[0]
    H = NUM_HEADS
    S = pos_ref.shape[0]
    Bt = N // S
    HD = D // H

    # --- feature embeddings: one block-structured [N,8] @ [8,3D] matmul ------
    feat_emb = (jnp.dot(feat_ref[...], w_feat_ref[...],
                        preferred_element_type=f32) + b_feat_ref[...])  # [N,3D]

    # --- positional slab: [S, D] constant tiled across the batch block -------
    pos = pos_ref[...]                                            # [S, D]
    if Bt == 1:
        pos_tiled = pos
    else:
        pos_tiled = jnp.broadcast_to(pos[None, :, :], (Bt, S, D)).reshape(N, D)

    # Lane-aligned concat (3D is a multiple of 128): no scratch round-trip.
    combined = jnp.concatenate([feat_emb, pos_tiled], axis=-1)    # [N, 4D]

    # --- prosody_mixer: LN -> Linear(4D,2D) -> GELU -> Linear(2D,D) -> LN ----
    # Matmuls take bf16 operands with f32 accumulation; LN/GELU stay f32.
    x = _layernorm(combined, ln1_g_ref[...], ln1_b_ref[...])
    h = (jnp.dot(x.astype(bf16), w1_ref[...], preferred_element_type=f32)
         + b1_ref[...])
    h = _gelu_exact(h)
    y = (jnp.dot(h.astype(bf16), w2_ref[...], preferred_element_type=f32)
         + b2_ref[...])
    enc = _layernorm(y, ln2_g_ref[...], ln2_b_ref[...])           # [N, D] f32

    # --- fused QKV projection into VMEM scratch: one [N,D] @ [D,3D] matmul ---
    qkv_ref[...] = (jnp.dot(enc.astype(bf16), wqkv_ref[...],
                            preferred_element_type=f32) + bqkv_ref[...])

    # --- head mask built in-kernel (iota + compare-sum; no HBM stream) -------
    ridx = jax.lax.broadcasted_iota(jnp.int32, (H * S, D), 0)
    cidx = jax.lax.broadcasted_iota(jnp.int32, (H * S, D), 1)
    row_head = jnp.zeros((H * S, D), jnp.int32)
    col_head = jnp.zeros((H * S, D), jnp.int32)
    for hh in range(1, H):
        row_head = row_head + (ridx >= hh * S).astype(jnp.int32)
        col_head = col_head + (cidx >= hh * HD).astype(jnp.int32)
    head_mask = (row_head == col_head).astype(f32)                # [H*S, D]

    scale = 1.0 / float(HD) ** 0.5

    # --- 8-head self-attention, one batch item per fori_loop iteration -------
    def attn_body(b, carry):
        r0 = pl.multiple_of(b * S, S)
        q_b = qkv_ref[pl.ds(r0, S), pl.ds(0, D)]          # [S, D]
        k_b = qkv_ref[pl.ds(r0, S), pl.ds(D, D)]          # [S, D]
        v_b = qkv_ref[pl.ds(r0, S), pl.ds(2 * D, D)]      # [S, D]

        # Replicate q across heads (sublane-aligned f32 tiles) and zero the
        # columns that do not belong to each head; one matmul then yields all
        # H score tiles stacked as [H*S, S].
        q_rep = jnp.concatenate([q_b] * H, axis=0) * head_mask    # [H*S, D]
        scores = jax.lax.dot_general(
            q_rep, k_b, (((1,), (1,)), ((), ())),
            preferred_element_type=f32) * scale                   # [H*S, S]

        # One stacked softmax for all heads (single max / sum reduction).
        scores = scores - jnp.max(scores, axis=-1, keepdims=True)
        p = jnp.exp(scores)
        p = p * pl.reciprocal(jnp.sum(p, axis=-1, keepdims=True), approx=True)

        # probs @ V for all heads at once, keep per-head columns, reduce heads.
        ctx_rows = (jnp.dot(p, v_b, preferred_element_type=f32)
                    * head_mask)                                  # [H*S, D]
        ctx_b = ctx_rows[0:S, :]
        for hh in range(1, H):
            ctx_b = ctx_b + ctx_rows[hh * S:(hh + 1) * S, :]
        ctx_ref[pl.ds(r0, S), :] = ctx_b
        return carry

    jax.lax.fori_loop(0, Bt, attn_body, 0)

    # --- single output projection over the whole block -----------------------
    out_ref[...] = (jnp.dot(ctx_ref[...].astype(bf16), wo_ref[...],
                            preferred_element_type=f32) + bo_ref[...])


# ------------------------------ host wrapper --------------------------------

def _const_spec(shape):
    nd = len(shape)
    return pl.BlockSpec(shape, lambda b, _nd=nd: (0,) * _nd)


def _pick_batch_block(B, S, max_rows):
    """Largest batch-block divisor of B whose flat row count fits the VMEM
    budget and is sublane-aligned, preferring >= 2 grid steps (v7x megacore /
    pipelining)."""
    cands = [d for d in range(1, B + 1)
             if B % d == 0 and d * S <= max_rows and (d * S) % 8 == 0]
    if not cands:
        # Fall back to one full-extent block (always a legal BlockSpec shape).
        return B
    multi = [d for d in cands if B // d >= 2]
    return max(multi) if multi else max(cands)


def prosody_encoder_pallas(params, emphasis, pause_duration, intonation,
                           *, max_block_rows=None):
    B, S = emphasis.shape
    D = params["w_e"].shape[1]
    N = B * S
    f32, bf16 = jnp.float32, jnp.bfloat16

    # --- VMEM budget, re-derived per generation (128 MiB v5e/v6e, 64 MiB v7x)
    try:
        vmem_cap = int(pltpu.get_tpu_info().vmem_capacity_bytes)
    except Exception:
        vmem_cap = 64 * 1024 * 1024          # conservative fallback (v7x-sized)
    vmem_limit = int(min(vmem_cap * 3 // 4, 112 * 1024 * 1024))
    if max_block_rows is None:
        # Rough per-row footprint: in/out blocks (double-buffered) + qkv/ctx
        # scratch + live f32 intermediates; resident weights subtracted once.
        row_bytes = 72 * D + 64
        weight_bytes = (4 * (4 * D * 2 * D + 2 * D * D + D * 3 * D + D * D)
                        + 8 * (8 * 3 * D + S * D + 16 * D))
        max_block_rows = max(8, min(4096,
                                    (vmem_limit // 2 - weight_bytes) // row_bytes))

    Bt = _pick_batch_block(B, S, max_block_rows)
    Nt = Bt * S

    # --- packed per-token features [B*S, 8]: emph, pause, onehot(3), pad(3) --
    oh = jax.nn.one_hot(intonation.astype(jnp.int32), 3, dtype=f32)
    feat = jnp.concatenate(
        [emphasis.astype(f32)[..., None],
         pause_duration.astype(f32)[..., None],
         oh,
         jnp.zeros((B, S, 3), f32)], axis=-1).reshape(N, 8)

    # --- block-structured feature weight [8, 3D] and bias [1, 3D] (f32) ------
    zD = jnp.zeros((1, D), f32)
    z3D = jnp.zeros((3, D), f32)
    w_feat = jnp.concatenate([
        jnp.concatenate([params["w_e"], zD, zD], axis=-1),        # row 0: emph
        jnp.concatenate([zD, params["w_p"], zD], axis=-1),        # row 1: pause
        jnp.concatenate([z3D, z3D, params["w_i"]], axis=-1),      # rows 2..4
        jnp.zeros((3, 3 * D), f32),                               # rows 5..7 pad
    ], axis=0)
    b_feat = jnp.concatenate(
        [params["b_e"], params["b_p"], params["b_i"]], axis=-1)

    pos = params["pos_table"][:S].astype(f32)                     # [S, D]

    # --- fused, lane-dense attention weights; big matmul weights in bf16 -----
    wqkv = jnp.concatenate([params["wq"], params["wk"], params["wv"]],
                           axis=-1).astype(bf16)
    bqkv = jnp.concatenate([params["bq"], params["bk"], params["bv"]], axis=-1)
    w1 = params["w1"].astype(bf16)
    w2 = params["w2"].astype(bf16)
    wo = params["wo"].astype(bf16)

    in_specs = [
        pl.BlockSpec((Nt, 8), lambda b: (b, 0)),        # packed features
        _const_spec((S, D)),                            # positional table
        _const_spec((8, 3 * D)), _const_spec((1, 3 * D)),       # w_feat, b_feat
        _const_spec((1, 4 * D)), _const_spec((1, 4 * D)),       # ln1 g, b
        _const_spec((4 * D, 2 * D)), _const_spec((1, 2 * D)),   # w1, b1
        _const_spec((2 * D, D)), _const_spec((1, D)),           # w2, b2
        _const_spec((1, D)), _const_spec((1, D)),               # ln2 g, b
        _const_spec((D, 3 * D)), _const_spec((1, 3 * D)),       # wqkv, bqkv
        _const_spec((D, D)), _const_spec((1, D)),               # wo, bo
    ]

    out2d = pl.pallas_call(
        _prosody_kernel,
        out_shape=jax.ShapeDtypeStruct((N, D), f32),
        grid=(B // Bt,),
        in_specs=in_specs,
        out_specs=pl.BlockSpec((Nt, D), lambda b: (b, 0)),
        scratch_shapes=[pltpu.VMEM((Nt, 3 * D), f32),   # fused QKV
                        pltpu.VMEM((Nt, D), f32)],      # attention context
        compiler_params=pltpu.CompilerParams(
            dimension_semantics=("parallel",),
            vmem_limit_bytes=vmem_limit),
    )(feat, pos, w_feat, b_feat,
      params["ln1_g"], params["ln1_b"], w1, params["b1"],
      w2, params["b2"], params["ln2_g"], params["ln2_b"],
      wqkv, bqkv, wo, params["bo"])

    return out2d.reshape(B, S, D)


# --------------------------- params & reference -----------------------------

def init_params(key, D):
    """Deterministic synthetic parameters.  Linear weights are stored in
    (in_features, out_features) layout (i.e. torch weight transposed)."""
    ks = jax.random.split(key, 24)

    def rnd(k, shape, scale=0.05):
        return jax.random.normal(k, shape, jnp.float32) * scale

    return {
        "w_e": rnd(ks[0], (1, D)), "b_e": rnd(ks[1], (1, D)),
        "w_p": rnd(ks[2], (1, D)), "b_p": rnd(ks[3], (1, D)),
        "w_i": rnd(ks[4], (3, D)), "b_i": rnd(ks[5], (1, D)),
        "pos_table": rnd(ks[6], (4096, D), 0.02),
        "ln1_g": 1.0 + rnd(ks[7], (1, 4 * D), 0.02),
        "ln1_b": rnd(ks[8], (1, 4 * D), 0.02),
        "w1": rnd(ks[9], (4 * D, 2 * D)), "b1": rnd(ks[10], (1, 2 * D)),
        "w2": rnd(ks[11], (2 * D, D)), "b2": rnd(ks[12], (1, D)),
        "ln2_g": 1.0 + rnd(ks[13], (1, D), 0.02),
        "ln2_b": rnd(ks[14], (1, D), 0.02),
        "wq": rnd(ks[15], (D, D)), "bq": rnd(ks[16], (1, D)),
        "wk": rnd(ks[17], (D, D)), "bk": rnd(ks[18], (1, D)),
        "wv": rnd(ks[19], (D, D)), "bv": rnd(ks[20], (1, D)),
        "wo": rnd(ks[21], (D, D)), "bo": rnd(ks[22], (1, D)),
    }


def reference_forward(params, emphasis, pause_duration, intonation):
    """Pure-JAX f32 reference mirroring the PyTorch forward (eval mode)."""
    B, S = emphasis.shape
    D = params["w_e"].shape[1]
    H, HD = NUM_HEADS, D // NUM_HEADS

    def ln(x, g, b):
        m = x.mean(-1, keepdims=True)
        v = ((x - m) ** 2).mean(-1, keepdims=True)
        return (x - m) / jnp.sqrt(v + LN_EPS) * g + b

    emph_emb = emphasis[..., None] * params["w_e"] + params["b_e"]
    pause_emb = pause_duration[..., None] * params["w_p"] + params["b_p"]
    oh = jax.nn.one_hot(intonation.astype(jnp.int32), 3, dtype=jnp.float32)
    into_emb = jnp.einsum("bst,td->bsd", oh, params["w_i"]) + params["b_i"]
    pos_emb = jnp.broadcast_to(params["pos_table"][:S][None], (B, S, D))
    combined = jnp.concatenate([emph_emb, pause_emb, into_emb, pos_emb], -1)

    x = ln(combined, params["ln1_g"], params["ln1_b"])
    h = jax.nn.gelu(x @ params["w1"] + params["b1"], approximate=False)
    enc = ln(h @ params["w2"] + params["b2"], params["ln2_g"], params["ln2_b"])

    q = (enc @ params["wq"] + params["bq"]).reshape(B, S, H, HD)
    k = (enc @ params["wk"] + params["bk"]).reshape(B, S, H, HD)
    v = (enc @ params["wv"] + params["bv"]).reshape(B, S, H, HD)
    scores = jnp.einsum("bqhd,bkhd->bhqk", q, k) / np.sqrt(HD)
    probs = jax.nn.softmax(scores, axis=-1)
    ctx = jnp.einsum("bhqk,bkhd->bqhd", probs, v).reshape(B, S, D)
    return ctx @ params["wo"] + params["bo"]


# ----------------------------------- main ------------------------------------

if __name__ == "__main__":
    B, S, D = 2, 8, 128  # dim=128 -> 8 heads of head_dim 16
    key = jax.random.PRNGKey(0)
    k_par, k_e, k_p, k_i = jax.random.split(key, 4)

    params = init_params(k_par, D)
    emphasis = jax.random.uniform(k_e, (B, S), jnp.float32)
    pause_duration = jax.random.uniform(k_p, (B, S), jnp.float32)
    intonation = jax.random.randint(k_i, (B, S), 0, 3)

    out = prosody_encoder_pallas(params, emphasis, pause_duration, intonation)
    out = jax.block_until_ready(out)
    assert out.shape == (B, S, D) and out.dtype == jnp.float32

    ref = reference_forward(params, emphasis, pause_duration, intonation)
    # Tolerance covers bf16 MXU operands (f32 accumulation) and the approx
    # reciprocal in the softmax denominator; structural errors are >> this.
    np.testing.assert_allclose(np.asarray(out), np.asarray(ref),
                               rtol=2e-2, atol=2e-2)
    print("KERNEL_OK")
</pallas_src>

<mosaic_0001>
module attributes {stable_mosaic.version = 11 : i64} {
  func.func @_prosody_kernel(%arg0: i32, %arg1: memref<8x8xf32, #tpu.memory_space<vmem>>, %arg2: memref<8x128xf32, #tpu.memory_space<vmem>>, %arg3: memref<8x384xf32, #tpu.memory_space<vmem>>, %arg4: memref<1x384xf32, #tpu.memory_space<vmem>>, %arg5: memref<1x512xf32, #tpu.memory_space<vmem>>, %arg6: memref<1x512xf32, #tpu.memory_space<vmem>>, %arg7: memref<512x256xbf16, #tpu.memory_space<vmem>>, %arg8: memref<1x256xf32, #tpu.memory_space<vmem>>, %arg9: memref<256x128xbf16, #tpu.memory_space<vmem>>, %arg10: memref<1x128xf32, #tpu.memory_space<vmem>>, %arg11: memref<1x128xf32, #tpu.memory_space<vmem>>, %arg12: memref<1x128xf32, #tpu.memory_space<vmem>>, %arg13: memref<128x384xbf16, #tpu.memory_space<vmem>>, %arg14: memref<1x384xf32, #tpu.memory_space<vmem>>, %arg15: memref<128x128xbf16, #tpu.memory_space<vmem>>, %arg16: memref<1x128xf32, #tpu.memory_space<vmem>>, %arg17: memref<8x128xf32, #tpu.memory_space<vmem>>, %arg18: memref<8x384xf32, #tpu.memory_space<vmem>>, %arg19: memref<8x128xf32, #tpu.memory_space<vmem>>) attributes {dimension_semantics = [#tpu.dimension_semantics<parallel>], iteration_bounds = array<i64: 2>, scalar_prefetch = 0 : i64, scratch_operands = 2 : i64, tpu.core_type = #tpu.core_type<tc>, window_params = [{transform_indices = @transform_0, window_bounds = array<i64: 8, 8>}, {pipeline_mode = #tpu.pipeline_mode<synchronous>, transform_indices = @transform_1, window_bounds = array<i64: 8, 128>}, {pipeline_mode = #tpu.pipeline_mode<synchronous>, transform_indices = @transform_2, window_bounds = array<i64: 8, 384>}, {pipeline_mode = #tpu.pipeline_mode<synchronous>, transform_indices = @transform_3, window_bounds = array<i64: 1, 384>}, {pipeline_mode = #tpu.pipeline_mode<synchronous>, transform_indices = @transform_4, window_bounds = array<i64: 1, 512>}, {pipeline_mode = #tpu.pipeline_mode<synchronous>, transform_indices = @transform_5, window_bounds = array<i64: 1, 512>}, {pipeline_mode = #tpu.pipeline_mode<synchronous>, transform_indices = @transform_6, window_bounds = array<i64: 512, 256>}, {pipeline_mode = #tpu.pipeline_mode<synchronous>, transform_indices = @transform_7, window_bounds = array<i64: 1, 256>}, {pipeline_mode = #tpu.pipeline_mode<synchronous>, transform_indices = @transform_8, window_bounds = array<i64: 256, 128>}, {pipeline_mode = #tpu.pipeline_mode<synchronous>, transform_indices = @transform_9, window_bounds = array<i64: 1, 128>}, {pipeline_mode = #tpu.pipeline_mode<synchronous>, transform_indices = @transform_10, window_bounds = array<i64: 1, 128>}, {pipeline_mode = #tpu.pipeline_mode<synchronous>, transform_indices = @transform_11, window_bounds = array<i64: 1, 128>}, {pipeline_mode = #tpu.pipeline_mode<synchronous>, transform_indices = @transform_12, window_bounds = array<i64: 128, 384>}, {pipeline_mode = #tpu.pipeline_mode<synchronous>, transform_indices = @transform_13, window_bounds = array<i64: 1, 384>}, {pipeline_mode = #tpu.pipeline_mode<synchronous>, transform_indices = @transform_14, window_bounds = array<i64: 128, 128>}, {pipeline_mode = #tpu.pipeline_mode<synchronous>, transform_indices = @transform_15, window_bounds = array<i64: 1, 128>}, {transform_indices = @transform_16, window_bounds = array<i64: 8, 128>}]} {
    %c0 = arith.constant 0 : index
    %c0_0 = arith.constant 0 : index
    %0 = vector.load %arg1[%c0, %c0_0] : memref<8x8xf32, #tpu.memory_space<vmem>>, vector<8x8xf32>
    %c0_1 = arith.constant 0 : index
    %c0_2 = arith.constant 0 : index
    %1 = vector.load %arg3[%c0_1, %c0_2] : memref<8x384xf32, #tpu.memory_space<vmem>>, vector<8x384xf32>
    %cst = arith.constant dense<0.000000e+00> : vector<8x384xf32>
    %2 = tpu.matmul %0, %1, %cst {dimension_numbers = #tpu.dot_dimension_numbers<[1], [0], [0], [1], [0, 0, 1, 1], [], []>} : vector<8x8xf32>, vector<8x384xf32>, vector<8x384xf32> -> vector<8x384xf32>
    %c0_3 = arith.constant 0 : index
    %c0_4 = arith.constant 0 : index
    %3 = vector.load %arg4[%c0_3, %c0_4] : memref<1x384xf32, #tpu.memory_space<vmem>>, vector<1x384xf32>
    %4 = vector.broadcast %3 : vector<1x384xf32> to vector<8x384xf32>
    %5 = arith.addf %2, %4 : vector<8x384xf32>
    %c0_5 = arith.constant 0 : index
    %c0_6 = arith.constant 0 : index
    %6 = vector.load %arg2[%c0_5, %c0_6] : memref<8x128xf32, #tpu.memory_space<vmem>>, vector<8x128xf32>
    %7 = tpu.concatenate %5, %6 in 1 : vector<8x384xf32>, vector<8x128xf32> -> vector<8x512xf32>
    %c0_7 = arith.constant 0 : index
    %c0_8 = arith.constant 0 : index
    %8 = vector.load %arg5[%c0_7, %c0_8] : memref<1x512xf32, #tpu.memory_space<vmem>>, vector<1x512xf32>
    %c0_9 = arith.constant 0 : index
    %c0_10 = arith.constant 0 : index
    %9 = vector.load %arg6[%c0_9, %c0_10] : memref<1x512xf32, #tpu.memory_space<vmem>>, vector<1x512xf32>
    %cst_11 = arith.constant dense<0.000000e+00> : vector<8xf32>
    %10 = vector.multi_reduction <add>, %7, %cst_11 [1] : vector<8x512xf32> to vector<8xf32>
    %11 = vector.shape_cast %10 : vector<8xf32> to vector<8x1xf32>
    %cst_12 = arith.constant 5.120000e+02 : f32
    %12 = vector.broadcast %cst_12 : f32 to vector<8x1xf32>
    %13 = arith.divf %11, %12 : vector<8x1xf32>
    %14 = vector.broadcast %13 : vector<8x1xf32> to vector<8x512xf32>
    %15 = arith.subf %7, %14 : vector<8x512xf32>
    %16 = arith.mulf %15, %15 : vector<8x512xf32>
    %cst_13 = arith.constant dense<0.000000e+00> : vector<8xf32>
    %17 = vector.multi_reduction <add>, %16, %cst_13 [1] : vector<8x512xf32> to vector<8xf32>
    %18 = vector.shape_cast %17 : vector<8xf32> to vector<8x1xf32>
    %cst_14 = arith.constant 5.120000e+02 : f32
    %19 = vector.broadcast %cst_14 : f32 to vector<8x1xf32>
    %20 = arith.divf %18, %19 : vector<8x1xf32>
    %21 = vector.broadcast %13 : vector<8x1xf32> to vector<8x512xf32>
    %22 = arith.subf %7, %21 : vector<8x512xf32>
    %cst_15 = arith.constant 9.99999974E-6 : f32
    %23 = vector.broadcast %cst_15 : f32 to vector<8x1xf32>
    %24 = arith.addf %20, %23 : vector<8x1xf32>
    %25 = math.rsqrt %24 : vector<8x1xf32>
    %26 = vector.broadcast %25 : vector<8x1xf32> to vector<8x512xf32>
    %27 = arith.mulf %22, %26 : vector<8x512xf32>
    %28 = vector.broadcast %8 : vector<1x512xf32> to vector<8x512xf32>
    %29 = arith.mulf %27, %28 : vector<8x512xf32>
    %30 = vector.broadcast %9 : vector<1x512xf32> to vector<8x512xf32>
    %31 = arith.addf %29, %30 : vector<8x512xf32>
    %32 = arith.truncf %31 : vector<8x512xf32> to vector<8x512xbf16>
    %c0_16 = arith.constant 0 : index
    %c0_17 = arith.constant 0 : index
    %33 = vector.load %arg7[%c0_16, %c0_17] : memref<512x256xbf16, #tpu.memory_space<vmem>>, vector<512x256xbf16>
    %cst_18 = arith.constant dense<0.000000e+00> : vector<8x256xf32>
    %34 = tpu.matmul %32, %33, %cst_18 {dimension_numbers = #tpu.dot_dimension_numbers<[1], [0], [0], [1], [0, 0, 1, 1], [], []>} : vector<8x512xbf16>, vector<512x256xbf16>, vector<8x256xf32> -> vector<8x256xf32>
    %c0_19 = arith.constant 0 : index
    %c0_20 = arith.constant 0 : index
    %35 = vector.load %arg8[%c0_19, %c0_20] : memref<1x256xf32, #tpu.memory_space<vmem>>, vector<1x256xf32>
    %36 = vector.broadcast %35 : vector<1x256xf32> to vector<8x256xf32>
    %37 = arith.addf %34, %36 : vector<8x256xf32>
    %cst_21 = arith.constant 5.000000e-01 : f32
    %38 = vector.broadcast %cst_21 : f32 to vector<8x256xf32>
    %39 = arith.mulf %38, %37 : vector<8x256xf32>
    %cst_22 = arith.constant 0.707106769 : f32
    %40 = vector.broadcast %cst_22 : f32 to vector<8x256xf32>
    %41 = arith.mulf %37, %40 : vector<8x256xf32>
    %42 = math.absf %41 : vector<8x256xf32>
    %cst_23 = arith.constant 0.327591091 : f32
    %43 = vector.broadcast %cst_23 : f32 to vector<8x256xf32>
    %44 = arith.mulf %43, %42 : vector<8x256xf32>
    %cst_24 = arith.constant 1.000000e+00 : f32
    %45 = vector.broadcast %cst_24 : f32 to vector<8x256xf32>
    %46 = arith.addf %45, %44 : vector<8x256xf32>
    %cst_25 = arith.constant 1.000000e+00 : f32
    %47 = vector.broadcast %cst_25 : f32 to vector<8x256xf32>
    %48 = arith.divf %47, %46 : vector<8x256xf32>
    %cst_26 = arith.constant 1.06140542 : f32
    %49 = vector.broadcast %cst_26 : f32 to vector<8x256xf32>
    %50 = arith.mulf %49, %48 : vector<8x256xf32>
    %cst_27 = arith.constant -1.45315206 : f32
    %51 = vector.broadcast %cst_27 : f32 to vector<8x256xf32>
    %52 = arith.addf %50, %51 : vector<8x256xf32>
    %53 = arith.mulf %52, %48 : vector<8x256xf32>
    %cst_28 = arith.constant 1.42141378 : f32
    %54 = vector.broadcast %cst_28 : f32 to vector<8x256xf32>
    %55 = arith.addf %53, %54 : vector<8x256xf32>
    %56 = arith.mulf %55, %48 : vector<8x256xf32>
    %cst_29 = arith.constant -0.284496725 : f32
    %57 = vector.broadcast %cst_29 : f32 to vector<8x256xf32>
    %58 = arith.addf %56, %57 : vector<8x256xf32>
    %59 = arith.mulf %58, %48 : vector<8x256xf32>
    %cst_30 = arith.constant 0.254829586 : f32
    %60 = vector.broadcast %cst_30 : f32 to vector<8x256xf32>
    %61 = arith.addf %59, %60 : vector<8x256xf32>
    %62 = arith.mulf %61, %48 : vector<8x256xf32>
    %cst_31 = arith.constant 0.000000e+00 : f32
    %63 = vector.broadcast %cst_31 : f32 to vector<8x256xf32>
    %64 = arith.subf %63, %42 : vector<8x256xf32>
    %65 = arith.mulf %64, %42 : vector<8x256xf32>
    %66 = math.exp %65 : vector<8x256xf32>
    %67 = arith.mulf %62, %66 : vector<8x256xf32>
    %cst_32 = arith.constant 1.000000e+00 : f32
    %68 = vector.broadcast %cst_32 : f32 to vector<8x256xf32>
    %69 = arith.subf %68, %67 : vector<8x256xf32>
    %cst_33 = arith.constant 0.000000e+00 : f32
    %70 = vector.broadcast %cst_33 : f32 to vector<8x256xf32>
    %71 = arith.cmpf oge, %41, %70 : vector<8x256xf32>
    %cst_34 = arith.constant 0.000000e+00 : f32
    %72 = vector.broadcast %cst_34 : f32 to vector<8x256xf32>
    %73 = arith.subf %72, %69 : vector<8x256xf32>
    %74 = arith.select %71, %69, %73 : vector<8x256xi1>, vector<8x256xf32>
    %cst_35 = arith.constant 1.000000e+00 : f32
    %75 = vector.broadcast %cst_35 : f32 to vector<8x256xf32>
    %76 = arith.addf %75, %74 : vector<8x256xf32>
    %77 = arith.mulf %39, %76 : vector<8x256xf32>
    %78 = arith.truncf %77 : vector<8x256xf32> to vector<8x256xbf16>
    %c0_36 = arith.constant 0 : index
    %c0_37 = arith.constant 0 : index
    %79 = vector.load %arg9[%c0_36, %c0_37] : memref<256x128xbf16, #tpu.memory_space<vmem>>, vector<256x128xbf16>
    %cst_38 = arith.constant dense<0.000000e+00> : vector<8x128xf32>
    %80 = tpu.matmul %78, %79, %cst_38 {dimension_numbers = #tpu.dot_dimension_numbers<[1], [0], [0], [1], [0, 0, 1, 1], [], []>} : vector<8x256xbf16>, vector<256x128xbf16>, vector<8x128xf32> -> vector<8x128xf32>
    %c0_39 = arith.constant 0 : index
    %c0_40 = arith.constant 0 : index
    %81 = vector.load %arg10[%c0_39, %c0_40] : memref<1x128xf32, #tpu.memory_space<vmem>>, vector<1x128xf32>
    %82 = vector.broadcast %81 : vector<1x128xf32> to vector<8x128xf32>
    %83 = arith.addf %80, %82 : vector<8x128xf32>
    %c0_41 = arith.constant 0 : index
    %c0_42 = arith.constant 0 : index
    %84 = vector.load %arg11[%c0_41, %c0_42] : memref<1x128xf32, #tpu.memory_space<vmem>>, vector<1x128xf32>
    %c0_43 = arith.constant 0 : index
    %c0_44 = arith.constant 0 : index
    %85 = vector.load %arg12[%c0_43, %c0_44] : memref<1x128xf32, #tpu.memory_space<vmem>>, vector<1x128xf32>
    %cst_45 = arith.constant dense<0.000000e+00> : vector<8xf32>
    %86 = vector.multi_reduction <add>, %83, %cst_45 [1] : vector<8x128xf32> to vector<8xf32>
    %87 = vector.shape_cast %86 : vector<8xf32> to vector<8x1xf32>
    %cst_46 = arith.constant 1.280000e+02 : f32
    %88 = vector.broadcast %cst_46 : f32 to vector<8x1xf32>
    %89 = arith.divf %87, %88 : vector<8x1xf32>
    %90 = vector.broadcast %89 : vector<8x1xf32> to vector<8x128xf32>
    %91 = arith.subf %83, %90 : vector<8x128xf32>
    %92 = arith.mulf %91, %91 : vector<8x128xf32>
    %cst_47 = arith.constant dense<0.000000e+00> : vector<8xf32>
    %93 = vector.multi_reduction <add>, %92, %cst_47 [1] : vector<8x128xf32> to vector<8xf32>
    %94 = vector.shape_cast %93 : vector<8xf32> to vector<8x1xf32>
    %cst_48 = arith.constant 1.280000e+02 : f32
    %95 = vector.broadcast %cst_48 : f32 to vector<8x1xf32>
    %96 = arith.divf %94, %95 : vector<8x1xf32>
    %97 = vector.broadcast %89 : vector<8x1xf32> to vector<8x128xf32>
    %98 = arith.subf %83, %97 : vector<8x128xf32>
    %cst_49 = arith.constant 9.99999974E-6 : f32
    %99 = vector.broadcast %cst_49 : f32 to vector<8x1xf32>
    %100 = arith.addf %96, %99 : vector<8x1xf32>
    %101 = math.rsqrt %100 : vector<8x1xf32>
    %102 = vector.broadcast %101 : vector<8x1xf32> to vector<8x128xf32>
    %103 = arith.mulf %98, %102 : vector<8x128xf32>
    %104 = vector.broadcast %84 : vector<1x128xf32> to vector<8x128xf32>
    %105 = arith.mulf %103, %104 : vector<8x128xf32>
    %106 = vector.broadcast %85 : vector<1x128xf32> to vector<8x128xf32>
    %107 = arith.addf %105, %106 : vector<8x128xf32>
    %108 = arith.truncf %107 : vector<8x128xf32> to vector<8x128xbf16>
    %c0_50 = arith.constant 0 : index
    %c0_51 = arith.constant 0 : index
    %109 = vector.load %arg13[%c0_50, %c0_51] : memref<128x384xbf16, #tpu.memory_space<vmem>>, vector<128x384xbf16>
    %cst_52 = arith.constant dense<0.000000e+00> : vector<8x384xf32>
    %110 = tpu.matmul %108, %109, %cst_52 {dimension_numbers = #tpu.dot_dimension_numbers<[1], [0], [0], [1], [0, 0, 1, 1], [], []>} : vector<8x128xbf16>, vector<128x384xbf16>, vector<8x384xf32> -> vector<8x384xf32>
    %c0_53 = arith.constant 0 : index
    %c0_54 = arith.constant 0 : index
    %111 = vector.load %arg14[%c0_53, %c0_54] : memref<1x384xf32, #tpu.memory_space<vmem>>, vector<1x384xf32>
    %112 = vector.broadcast %111 : vector<1x384xf32> to vector<8x384xf32>
    %113 = arith.addf %110, %112 : vector<8x384xf32>
    %c0_55 = arith.constant 0 : index
    %c0_56 = arith.constant 0 : index
    %114 = vector.load %arg18[%c0_55, %c0_56] : memref<8x384xf32, #tpu.memory_space<vmem>>, vector<8x384xf32>
    tpu.vector_store %arg18[%c0_55, %c0_56], %113 {strides = array<i32>} : memref<8x384xf32, #tpu.memory_space<vmem>>, vector<8x384xf32>,
    %115 = tpu.iota {dimensions = array<i32: 0>} : vector<64x128xi32>
    %116 = tpu.iota {dimensions = array<i32: 1>} : vector<64x128xi32>
    %c0_i32 = arith.constant 0 : i32
    %117 = vector.broadcast %c0_i32 : i32 to vector<64x128xi32>
    %c0_i32_57 = arith.constant 0 : i32
    %118 = vector.broadcast %c0_i32_57 : i32 to vector<64x128xi32>
    %c8_i32 = arith.constant 8 : i32
    %119 = vector.broadcast %c8_i32 : i32 to vector<64x128xi32>
    %120 = arith.cmpi sge, %115, %119 : vector<64x128xi32>
    %121 = arith.extui %120 : vector<64x128xi1> to vector<64x128xi32>
    %122 = arith.addi %117, %121 : vector<64x128xi32>
    %c16_i32 = arith.constant 16 : i32
    %123 = vector.broadcast %c16_i32 : i32 to vector<64x128xi32>
    %124 = arith.cmpi sge, %116, %123 : vector<64x128xi32>
    %125 = arith.extui %124 : vector<64x128xi1> to vector<64x128xi32>
    %126 = arith.addi %118, %125 : vector<64x128xi32>
    %c16_i32_58 = arith.constant 16 : i32
    %127 = vector.broadcast %c16_i32_58 : i32 to vector<64x128xi32>
    %128 = arith.cmpi sge, %115, %127 : vector<64x128xi32>
    %129 = arith.extui %128 : vector<64x128xi1> to vector<64x128xi32>
    %130 = arith.addi %122, %129 : vector<64x128xi32>
    %c32_i32 = arith.constant 32 : i32
    %131 = vector.broadcast %c32_i32 : i32 to vector<64x128xi32>
    %132 = arith.cmpi sge, %116, %131 : vector<64x128xi32>
    %133 = arith.extui %132 : vector<64x128xi1> to vector<64x128xi32>
    %134 = arith.addi %126, %133 : vector<64x128xi32>
    %c24_i32 = arith.constant 24 : i32
    %135 = vector.broadcast %c24_i32 : i32 to vector<64x128xi32>
    %136 = arith.cmpi sge, %115, %135 : vector<64x128xi32>
    %137 = arith.extui %136 : vector<64x128xi1> to vector<64x128xi32>
    %138 = arith.addi %130, %137 : vector<64x128xi32>
    %c48_i32 = arith.constant 48 : i32
    %139 = vector.broadcast %c48_i32 : i32 to vector<64x128xi32>
    %140 = arith.cmpi sge, %116, %139 : vector<64x128xi32>
    %141 = arith.extui %140 : vector<64x128xi1> to vector<64x128xi32>
    %142 = arith.addi %134, %141 : vector<64x128xi32>
    %c32_i32_59 = arith.constant 32 : i32
    %143 = vector.broadcast %c32_i32_59 : i32 to vector<64x128xi32>
    %144 = arith.cmpi sge, %115, %143 : vector<64x128xi32>
    %145 = arith.extui %144 : vector<64x128xi1> to vector<64x128xi32>
    %146 = arith.addi %138, %145 : vector<64x128xi32>
    %c64_i32 = arith.constant 64 : i32
    %147 = vector.broadcast %c64_i32 : i32 to vector<64x128xi32>
    %148 = arith.cmpi sge, %116, %147 : vector<64x128xi32>
    %149 = arith.extui %148 : vector<64x128xi1> to vector<64x128xi32>
    %150 = arith.addi %142, %149 : vector<64x128xi32>
    %c40_i32 = arith.constant 40 : i32
    %151 = vector.broadcast %c40_i32 : i32 to vector<64x128xi32>
    %152 = arith.cmpi sge, %115, %151 : vector<64x128xi32>
    %153 = arith.extui %152 : vector<64x128xi1> to vector<64x128xi32>
    %154 = arith.addi %146, %153 : vector<64x128xi32>
    %c80_i32 = arith.constant 80 : i32
    %155 = vector.broadcast %c80_i32 : i32 to vector<64x128xi32>
    %156 = arith.cmpi sge, %116, %155 : vector<64x128xi32>
    %157 = arith.extui %156 : vector<64x128xi1> to vector<64x128xi32>
    %158 = arith.addi %150, %157 : vector<64x128xi32>
    %c48_i32_60 = arith.constant 48 : i32
    %159 = vector.broadcast %c48_i32_60 : i32 to vector<64x128xi32>
    %160 = arith.cmpi sge, %115, %159 : vector<64x128xi32>
    %161 = arith.extui %160 : vector<64x128xi1> to vector<64x128xi32>
    %162 = arith.addi %154, %161 : vector<64x128xi32>
    %c96_i32 = arith.constant 96 : i32
    %163 = vector.broadcast %c96_i32 : i32 to vector<64x128xi32>
    %164 = arith.cmpi sge, %116, %163 : vector<64x128xi32>
    %165 = arith.extui %164 : vector<64x128xi1> to vector<64x128xi32>
    %166 = arith.addi %158, %165 : vector<64x128xi32>
    %c56_i32 = arith.constant 56 : i32
    %167 = vector.broadcast %c56_i32 : i32 to vector<64x128xi32>
    %168 = arith.cmpi sge, %115, %167 : vector<64x128xi32>
    %169 = arith.extui %168 : vector<64x128xi1> to vector<64x128xi32>
    %170 = arith.addi %162, %169 : vector<64x128xi32>
    %c112_i32 = arith.constant 112 : i32
    %171 = vector.broadcast %c112_i32 : i32 to vector<64x128xi32>
    %172 = arith.cmpi sge, %116, %171 : vector<64x128xi32>
    %173 = arith.extui %172 : vector<64x128xi1> to vector<64x128xi32>
    %174 = arith.addi %166, %173 : vector<64x128xi32>
    %175 = arith.cmpi eq, %170, %174 : vector<64x128xi32>
    %176 = arith.extui %175 : vector<64x128xi1> to vector<64x128xi32>
    %177 = arith.sitofp %176 : vector<64x128xi32> to vector<64x128xf32>
    %c0_i32_61 = arith.constant 0 : i32
    %c8_i32_62 = arith.constant 8 : i32
    %178 = arith.muli %c0_i32_61, %c8_i32_62 : i32
    %179 = tpu.assume_multiple %178, 8 : i32
    %180 = arith.index_cast %179 : i32 to index
    %c0_63 = arith.constant 0 : index
    %181 = vector.load %arg18[%180, %c0_63] : memref<8x384xf32, #tpu.memory_space<vmem>>, vector<8x128xf32>
    %182 = arith.index_cast %179 : i32 to index
    %c128 = arith.constant 128 : index
    %183 = vector.load %arg18[%182, %c128] : memref<8x384xf32, #tpu.memory_space<vmem>>, vector<8x128xf32>
    %184 = arith.index_cast %179 : i32 to index
    %c256 = arith.constant 256 : index
    %185 = vector.load %arg18[%184, %c256] : memref<8x384xf32, #tpu.memory_space<vmem>>, vector<8x128xf32>
    %186 = tpu.concatenate %181, %181, %181, %181, %181, %181, %181, %181 in 0 : vector<8x128xf32>, vector<8x128xf32>, vector<8x128xf32>, vector<8x128xf32>, vector<8x128xf32>, vector<8x128xf32>, vector<8x128xf32>, vector<8x128xf32> -> vector<64x128xf32>
    %187 = arith.mulf %186, %177 : vector<64x128xf32>
    %cst_64 = arith.constant dense<0.000000e+00> : vector<64x8xf32>
    %188 = tpu.matmul %187, %183, %cst_64 {dimension_numbers = #tpu.dot_dimension_numbers<[1], [1], [0], [0], [0, 0, 1, 0], [], []>} : vector<64x128xf32>, vector<8x128xf32>, vector<64x8xf32> -> vector<64x8xf32>
    %cst_65 = arith.constant 2.500000e-01 : f32
    %189 = vector.broadcast %cst_65 : f32 to vector<64x8xf32>
    %190 = arith.mulf %188, %189 : vector<64x8xf32>
    %cst_66 = arith.constant dense<0xFF800000> : vector<64xf32>
    %191 = vector.multi_reduction <maximumf>, %190, %cst_66 [1] : vector<64x8xf32> to vector<64xf32>
    %192 = vector.shape_cast %191 : vector<64xf32> to vector<64x1xf32>
    %193 = vector.broadcast %192 : vector<64x1xf32> to vector<64x8xf32>
    %194 = arith.subf %190, %193 : vector<64x8xf32>
    %195 = math.exp %194 : vector<64x8xf32>
    %cst_67 = arith.constant dense<0.000000e+00> : vector<64xf32>
    %196 = vector.multi_reduction <add>, %195, %cst_67 [1] : vector<64x8xf32> to vector<64xf32>
    %197 = vector.shape_cast %196 : vector<64xf32> to vector<64x1xf32>
    %198 = tpu.reciprocal %197 {approx = true} : vector<64x1xf32> -> vector<64x1xf32>
    %199 = vector.broadcast %198 : vector<64x1xf32> to vector<64x8xf32>
    %200 = arith.mulf %195, %199 : vector<64x8xf32>
    %cst_68 = arith.constant dense<0.000000e+00> : vector<64x128xf32>
    %201 = tpu.matmul %200, %185, %cst_68 {dimension_numbers = #tpu.dot_dimension_numbers<[1], [0], [0], [1], [0, 0, 1, 1], [], []>} : vector<64x8xf32>, vector<8x128xf32>, vector<64x128xf32> -> vector<64x128xf32>
    %202 = arith.mulf %201, %177 : vector<64x128xf32>
    %203 = vector.extract_strided_slice %202 {offsets = [0, 0], sizes = [8, 128], strides = [1, 1]} : vector<64x128xf32> to vector<8x128xf32>
    %204 = vector.extract_strided_slice %202 {offsets = [8, 0], sizes = [8, 128], strides = [1, 1]} : vector<64x128xf32> to vector<8x128xf32>
    %205 = arith.addf %203, %204 : vector<8x128xf32>
    %206 = vector.extract_strided_slice %202 {offsets = [16, 0], sizes = [8, 128], strides = [1, 1]} : vector<64x128xf32> to vector<8x128xf32>
    %207 = arith.addf %205, %206 : vector<8x128xf32>
    %208 = vector.extract_strided_slice %202 {offsets = [24, 0], sizes = [8, 128], strides = [1, 1]} : vector<64x128xf32> to vector<8x128xf32>
    %209 = arith.addf %207, %208 : vector<8x128xf32>
    %210 = vector.extract_strided_slice %202 {offsets = [32, 0], sizes = [8, 128], strides = [1, 1]} : vector<64x128xf32> to vector<8x128xf32>
    %211 = arith.addf %209, %210 : vector<8x128xf32>
    %212 = vector.extract_strided_slice %202 {offsets = [40, 0], sizes = [8, 128], strides = [1, 1]} : vector<64x128xf32> to vector<8x128xf32>
    %213 = arith.addf %211, %212 : vector<8x128xf32>
    %214 = vector.extract_strided_slice %202 {offsets = [48, 0], sizes = [8, 128], strides = [1, 1]} : vector<64x128xf32> to vector<8x128xf32>
    %215 = arith.addf %213, %214 : vector<8x128xf32>
    %216 = vector.extract_strided_slice %202 {offsets = [56, 0], sizes = [8, 128], strides = [1, 1]} : vector<64x128xf32> to vector<8x128xf32>
    %217 = arith.addf %215, %216 : vector<8x128xf32>
    %218 = arith.index_cast %179 : i32 to index
    %c0_69 = arith.constant 0 : index
    %219 = vector.load %arg19[%218, %c0_69] : memref<8x128xf32, #tpu.memory_space<vmem>>, vector<8x128xf32>
    tpu.vector_store %arg19[%218, %c0_69], %217 {strides = array<i32>} : memref<8x128xf32, #tpu.memory_space<vmem>>, vector<8x128xf32>,
    %c1_i32 = arith.constant 1 : i32
    %c0_70 = arith.constant 0 : index
    %c0_71 = arith.constant 0 : index
    %220 = vector.load %arg19[%c0_70, %c0_71] : memref<8x128xf32, #tpu.memory_space<vmem>>, vector<8x128xf32>
    %221 = arith.truncf %220 : vector<8x128xf32> to vector<8x128xbf16>
    %c0_72 = arith.constant 0 : index
    %c0_73 = arith.constant 0 : index
    %222 = vector.load %arg15[%c0_72, %c0_73] : memref<128x128xbf16, #tpu.memory_space<vmem>>, vector<128x128xbf16>
    %cst_74 = arith.constant dense<0.000000e+00> : vector<8x128xf32>
    %223 = tpu.matmul %221, %222, %cst_74 {dimension_numbers = #tpu.dot_dimension_numbers<[1], [0], [0], [1], [0, 0, 1, 1], [], []>} : vector<8x128xbf16>, vector<128x128xbf16>, vector<8x128xf32> -> vector<8x128xf32>
    %c0_75 = arith.constant 0 : index
    %c0_76 = arith.constant 0 : index
    %224 = vector.load %arg16[%c0_75, %c0_76] : memref<1x128xf32, #tpu.memory_space<vmem>>, vector<1x128xf32>
    %225 = vector.broadcast %224 : vector<1x128xf32> to vector<8x128xf32>
    %226 = arith.addf %223, %225 : vector<8x128xf32>
    %c0_77 = arith.constant 0 : index
    %c0_78 = arith.constant 0 : index
    %227 = vector.load %arg17[%c0_77, %c0_78] : memref<8x128xf32, #tpu.memory_space<vmem>>, vector<8x128xf32>
    tpu.vector_store %arg17[%c0_77, %c0_78], %226 {strides = array<i32>} : memref<8x128xf32, #tpu.memory_space<vmem>>, vector<8x128xf32>,
    return
  }
  func.func @transform_0(%arg0: i32) -> (i32, i32) {
    %c0_i32 = arith.constant 0 : i32
    %c0_i32_0 = arith.constant 0 : i32
    return %arg0, %c0_i32 : i32, i32
  }
  func.func @transform_1(%arg0: i32) -> (i32, i32) {
    %c0_i32 = arith.constant 0 : i32
    %c0_i32_0 = arith.constant 0 : i32
    %c0_i32_1 = arith.constant 0 : i32
    return %c0_i32, %c0_i32_0 : i32, i32
  }
  func.func @transform_2(%arg0: i32) -> (i32, i32) {
    %c0_i32 = arith.constant 0 : i32
    %c0_i32_0 = arith.constant 0 : i32
    %c0_i32_1 = arith.constant 0 : i32
    return %c0_i32, %c0_i32_0 : i32, i32
  }
  func.func @transform_3(%arg0: i32) -> (i32, i32) {
    %c0_i32 = arith.constant 0 : i32
    %c0_i32_0 = arith.constant 0 : i32
    %c0_i32_1 = arith.constant 0 : i32
    return %c0_i32, %c0_i32_0 : i32, i32
  }
  func.func @transform_4(%arg0: i32) -> (i32, i32) {
    %c0_i32 = arith.constant 0 : i32
    %c0_i32_0 = arith.constant 0 : i32
    %c0_i32_1 = arith.constant 0 : i32
    return %c0_i32, %c0_i32_0 : i32, i32
  }
  func.func @transform_5(%arg0: i32) -> (i32, i32) {
    %c0_i32 = arith.constant 0 : i32
    %c0_i32_0 = arith.constant 0 : i32
    %c0_i32_1 = arith.constant 0 : i32
    return %c0_i32, %c0_i32_0 : i32, i32
  }
  func.func @transform_6(%arg0: i32) -> (i32, i32) {
    %c0_i32 = arith.constant 0 : i32
    %c0_i32_0 = arith.constant 0 : i32
    %c0_i32_1 = arith.constant 0 : i32
    return %c0_i32, %c0_i32_0 : i32, i32
  }
  func.func @transform_7(%arg0: i32) -> (i32, i32) {
    %c0_i32 = arith.constant 0 : i32
    %c0_i32_0 = arith.constant 0 : i32
    %c0_i32_1 = arith.constant 0 : i32
    return %c0_i32, %c0_i32_0 : i32, i32
  }
  func.func @transform_8(%arg0: i32) -> (i32, i32) {
    %c0_i32 = arith.constant 0 : i32
    %c0_i32_0 = arith.constant 0 : i32
    %c0_i32_1 = arith.constant 0 : i32
    return %c0_i32, %c0_i32_0 : i32, i32
  }
  func.func @transform_9(%arg0: i32) -> (i32, i32) {
    %c0_i32 = arith.constant 0 : i32
    %c0_i32_0 = arith.constant 0 : i32
    %c0_i32_1 = arith.constant 0 : i32
    return %c0_i32, %c0_i32_0 : i32, i32
  }
  func.func @transform_10(%arg0: i32) -> (i32, i32) {
    %c0_i32 = arith.constant 0 : i32
    %c0_i32_0 = arith.constant 0 : i32
    %c0_i32_1 = arith.constant 0 : i32
    return %c0_i32, %c0_i32_0 : i32, i32
  }
  func.func @transform_11(%arg0: i32) -> (i32, i32) {
    %c0_i32 = arith.constant 0 : i32
    %c0_i32_0 = arith.constant 0 : i32
    %c0_i32_1 = arith.constant 0 : i32
    return %c0_i32, %c0_i32_0 : i32, i32
  }
  func.func @transform_12(%arg0: i32) -> (i32, i32) {
    %c0_i32 = arith.constant 0 : i32
    %c0_i32_0 = arith.constant 0 : i32
    %c0_i32_1 = arith.constant 0 : i32
    return %c0_i32, %c0_i32_0 : i32, i32
  }
  func.func @transform_13(%arg0: i32) -> (i32, i32) {
    %c0_i32 = arith.constant 0 : i32
    %c0_i32_0 = arith.constant 0 : i32
    %c0_i32_1 = arith.constant 0 : i32
    return %c0_i32, %c0_i32_0 : i32, i32
  }
  func.func @transform_14(%arg0: i32) -> (i32, i32) {
    %c0_i32 = arith.constant 0 : i32
    %c0_i32_0 = arith.constant 0 : i32
    %c0_i32_1 = arith.constant 0 : i32
    return %c0_i32, %c0_i32_0 : i32, i32
  }
  func.func @transform_15(%arg0: i32) -> (i32, i32) {
    %c0_i32 = arith.constant 0 : i32
    %c0_i32_0 = arith.constant 0 : i32
    %c0_i32_1 = arith.constant 0 : i32
    return %c0_i32, %c0_i32_0 : i32, i32
  }
  func.func @transform_16(%arg0: i32) -> (i32, i32) {
    %c0_i32 = arith.constant 0 : i32
    %c0_i32_0 = arith.constant 0 : i32
    return %arg0, %c0_i32 : i32, i32
  }
}

</mosaic_0001>

<llo_original>
// kernel: tpu_custom_call.1
$region0: #{tpu_custom_call.1}
  #allocation0 [shape = 'u32[]', space=smem, size = 0x4, offset = 0x4, fixed_abs, tag = 'smem constant byte address 0x4 - core index']
  #allocation1 [shape = 'u32[72,128]{1,0:T(1,128)}', space=vmem, size = 0x9000, scoped, tag = 'internal scratch']
  #allocation2 [shape = 'f32[8,384]{1,0:T(8,128)}', space=vmem, size = 0x3000, scoped, tag = 'scratch operand']
  #allocation3 [shape = 'f32[8,128]{1,0:T(8,128)}', space=vmem, size = 0x1000, scoped, tag = 'scratch operand']
  %s0 = inlined_call_operand.vmem [shape: f32[16,8], index: 0, kind: input, shape index: {}]
  %s1 = inlined_call_operand.hbm [shape: f32[8,128], index: 1, kind: input, shape index: {}]
  %s2 = inlined_call_operand.vmem [shape: f32[8,384], index: 2, kind: input, shape index: {}]
  %s3 = inlined_call_operand.hbm [shape: f32[1,384], index: 3, kind: input, shape index: {}]
  %s4 = inlined_call_operand.hbm [shape: f32[1,512], index: 4, kind: input, shape index: {}]
  %s5 = inlined_call_operand.vmem [shape: f32[1,512], index: 5, kind: input, shape index: {}]
  %s6 = inlined_call_operand.hbm [shape: bf16[512,256], index: 6, kind: input, shape index: {}]
  %s7 = inlined_call_operand.hbm [shape: f32[1,256], index: 7, kind: input, shape index: {}]
  %s8 = inlined_call_operand.hbm [shape: bf16[256,128], index: 8, kind: input, shape index: {}]
  %s9 = inlined_call_operand.vmem [shape: f32[1,128], index: 9, kind: input, shape index: {}]
  %s10 = inlined_call_operand.vmem [shape: f32[1,128], index: 10, kind: input, shape index: {}]
  %s11 = inlined_call_operand.vmem [shape: f32[1,128], index: 11, kind: input, shape index: {}]
  %s12 = inlined_call_operand.hbm [shape: bf16[128,384], index: 12, kind: input, shape index: {}]
  %s13 = inlined_call_operand.vmem [shape: f32[1,384], index: 13, kind: input, shape index: {}]
  %s14 = inlined_call_operand.hbm [shape: bf16[128,128], index: 14, kind: input, shape index: {}]
  %s15 = inlined_call_operand.vmem [shape: f32[1,128], index: 15, kind: input, shape index: {}]
  %s16 = inlined_call_operand.hbm [shape: f32[16,128], index: 16, kind: output, shape index: {}]
  %s17 = sld [smem:[#allocation0]]
  $region129: #{tpu_custom_call.1} parent=0
    _
  %s19 = ssub.s32 1, %s17
  %s20 = scalar_select 0, %s19, %s17
  $region1: #{tpu_custom_call.1} parent=0
    #allocation4 [shape = 'u8[4096]{0}', space=vmem, size = 0x1000, scoped, tag = 'input window, operand 1, single buffered']
    #allocation5 [shape = 's32[2]{0}', space=sflag, size = 0x8, scoped, tag = 'scoped memory for tpu_custom_call.1']
    #allocation6 [shape = 's32[2]{0}', space=sflag, size = 0x8, scoped, tag = 'scoped memory for tpu_custom_call.1']
    #allocation7 [shape = 'u8[1536]{0}', space=vmem, size = 0x800, scoped, tag = 'input window, operand 3, single buffered']
    #allocation8 [shape = 's32[1]{0}', space=sflag, size = 0x4, scoped, tag = 'scoped memory for tpu_custom_call.1']
    #allocation9 [shape = 'u8[2048]{0}', space=vmem, size = 0x800, scoped, tag = 'input window, operand 4, single buffered']
    #allocation10 [shape = 'u8[262144]{0}', space=vmem, size = 0x40000, scoped, tag = 'input window, operand 6, single buffered']
    #allocation11 [shape = 's32[1]{0}', space=sflag, size = 0x4, scoped, tag = 'scoped memory for tpu_custom_call.1']
    #allocation12 [shape = 'u8[1024]{0}', space=vmem, size = 0x400, scoped, tag = 'input window, operand 7, single buffered']
    #allocation13 [shape = 'u8[65536]{0}', space=vmem, size = 0x10000, scoped, tag = 'input window, operand 8, single buffered']
    #allocation14 [shape = 's32[1]{0}', space=sflag, size = 0x4, scoped, tag = 'scoped memory for tpu_custom_call.1']
    #allocation15 [shape = 'u8[98304]{0}', space=vmem, size = 0x18000, scoped, tag = 'input window, operand 12, single buffered']
    #allocation16 [shape = 'u8[32768]{0}', space=vmem, size = 0x8000, scoped, tag = 'input window, operand 14, single buffered']
    #allocation17 [shape = 's32[1]{0}', space=sflag, size = 0x4, scoped, tag = 'scoped memory for tpu_custom_call.1']
    #allocation18 [shape = 'u8[8192]{0}', space=vmem, size = 0x2000, scoped, tag = 'output window, operand 0']
    %21 = vsyncpa [#allocation5], 0
    %22 = vsyncpa [#allocation8], 0
    %23 = vsyncpa [#allocation11], 0
    %24 = vsyncpa [#allocation14], 0
    %25 = vsyncpa [#allocation17], 0
    %26 = vsyncpa [#allocation6], 0
    %s27 = scalar_lea.sflag [#allocation6], 1
    %28 = vsyncpa %s27, 0
    loop: start=0, step=1, limit=4
    $region2: #{tpu_custom_call.1} parent=1 // loop_pre_header
      _
    $region3: #{tpu_custom_call.1} parent=1 // loop_header
      %s30 = sphi 0, %s34
      %p31 = scmp.ge.s32.totalorder %s30, 4
      %s40 = sphi 0, %s42
      %s43 = sphi 0, %s40
      %s44 = sphi 0, %s43
      %s60 = sphi 0, %s44
      %s64 = sphi 0, %s64
      %s66 = sphi 0, %s64
      %s67 = sphi 0, %s66
      %s81 = sphi 0, %s67
      %s85 = sphi 0, %s85
      %s87 = sphi 0, %s85
      %s88 = sphi 0, %s87
      %s102 = sphi 0, %s88
      %s106 = sphi 0, %s106
      %s108 = sphi 0, %s106
      %s109 = sphi 0, %s108
      %s123 = sphi 0, %s109
      %s127 = sphi 0, %s127
      %s129 = sphi 0, %s127
      %s130 = sphi 0, %s129
      %s144 = sphi 0, %s130
      %s148 = sphi 0, %s148
      %s150 = sphi 0, %s148
      %s151 = sphi 0, %s150
      %s165 = sphi 0, %s151
      %s169 = sphi 0, %s169
      %s171 = sphi 0, %s169
      %s172 = sphi 0, %s171
      %s186 = sphi 0, %s172
      %s190 = sphi 0, %s190
      %s192 = sphi 0, %s190
      %s193 = sphi 0, %s192
      %s207 = sphi 0, %s193
      %s211 = sphi 0, %s211
      %s213 = sphi 0, %s211
      %s214 = sphi 0, %s213
      %s228 = sphi 0, %s214
      %s232 = sphi 0, %s232
      %s234 = sphi 0, %s232
      %s235 = sphi 0, %s234
      %s249 = sphi 0, %s235
      %s253 = sphi 0, %s253
      %s255 = sphi 0, %s253
      %s256 = sphi 0, %s255
      %s270 = sphi 0, %s256
      %s274 = sphi 0, %s274
      %s276 = sphi 0, %s274
      %s277 = sphi 0, %s276
      %s291 = sphi 0, %s277
      %s295 = sphi 0, %s295
      %s297 = sphi 0, %s295
      %s298 = sphi 0, %s297
      %s312 = sphi 0, %s298
      %s316 = sphi 0, %s316
      %s318 = sphi 0, %s316
      %s319 = sphi 0, %s318
      %s333 = sphi 0, %s319
      %s337 = sphi 0, %s337
      %s339 = sphi 0, %s337
      %s340 = sphi 0, %s339
      %s354 = sphi 0, %s340
      %s358 = sphi 0, %s358
      %s360 = sphi 0, %s358
      %s361 = sphi 0, %s360
      %s375 = sphi 0, %s361
      %s381 = sphi 0, %s383
      %s384 = sphi 0, %s381
      %s385 = sphi 0, %s384
      %s401 = sphi 0, %s385
    $region4: #{tpu_custom_call.1} parent=1 // loop_header_branch
      %33 = sbr.rel (%p31) target = $region8
    $region5: #{tpu_custom_call.1} parent=1 // loop_body
      %s35 = ssub.s32 %s30, 1
      %s36 = ssub.s32 %s30, 2
      %s37 = sadd.s32 %s30, 1
      %s38 = ssub.s32 %s30, %s37
      %p39 = scmp.eq.s32.totalorder %s38, 0
      %s41 = sadd.s32 %s40, 1
      %s42 = scalar_select %p39, %s40, %s41
      %p45 = pneg %p39
      %p46 = scmp.eq.s32.totalorder %s30, 1
      %p47 = por %p45, %p46
      %p48 = scmp.ne.s32.totalorder %s40, %s43
      %p49 = scmp.eq.s32.totalorder %s30, 0
      %p50 = por %p48, %p49
      %p51 = scmp.ne.s32.totalorder %s40, %s43
      %p52 = scmp.eq.s32.totalorder %s35, 1
      %p53 = por %p51, %p52
      %p54 = scmp.ne.s32.totalorder %s43, %s44
      %p55 = scmp.eq.s32.totalorder %s35, 0
      %p56 = por %p54, %p55
      %p57 = scmp.ne.s32.totalorder %s43, %s44
      %p58 = scmp.eq.s32.totalorder %s36, 1
      %p59 = por %p57, %p58
      %p61 = scmp.ne.s32.totalorder %s44, %s60
      %p62 = scmp.eq.s32.totalorder %s36, 0
      %p63 = por %p61, %p62
      %s65 = sadd.s32 %s64, 1
      %p68 = scmp.eq.s32.totalorder %s30, 1
      %p69 = scmp.ne.s32.totalorder %s64, %s66
      %p70 = scmp.eq.s32.totalorder %s30, 0
      %p71 = por %p69, %p70
      %p72 = scmp.ne.s32.totalorder %s64, %s66
      %p73 = scmp.eq.s32.totalorder %s35, 1
      %p74 = por %p72, %p73
      %p75 = scmp.ne.s32.totalorder %s66, %s67
      %p76 = scmp.eq.s32.totalorder %s35, 0
      %p77 = por %p75, %p76
      %p78 = scmp.ne.s32.totalorder %s66, %s67
      %p79 = scmp.eq.s32.totalorder %s36, 1
      %p80 = por %p78, %p79
      %p82 = scmp.ne.s32.totalorder %s67, %s81
      %p83 = scmp.eq.s32.totalorder %s36, 0
      %p84 = por %p82, %p83
      %s86 = sadd.s32 %s85, 1
      %p89 = scmp.eq.s32.totalorder %s30, 1
      %p90 = scmp.ne.s32.totalorder %s85, %s87
      %p91 = scmp.eq.s32.totalorder %s30, 0
      %p92 = por %p90, %p91
      %p93 = scmp.ne.s32.totalorder %s85, %s87
      %p94 = scmp.eq.s32.totalorder %s35, 1
      %p95 = por %p93, %p94
      %p96 = scmp.ne.s32.totalorder %s87, %s88
      %p97 = scmp.eq.s32.totalorder %s35, 0
      %p98 = por %p96, %p97
      %p99 = scmp.ne.s32.totalorder %s87, %s88
      %p100 = scmp.eq.s32.totalorder %s36, 1
      %p101 = por %p99, %p100
      %p103 = scmp.ne.s32.totalorder %s88, %s102
      %p104 = scmp.eq.s32.totalorder %s36, 0
      %p105 = por %p103, %p104
      %s107 = sadd.s32 %s106, 1
      %p110 = scmp.eq.s32.totalorder %s30, 1
      %p111 = scmp.ne.s32.totalorder %s106, %s108
      %p112 = scmp.eq.s32.totalorder %s30, 0
      %p113 = por %p111, %p112
      %p114 = scmp.ne.s32.totalorder %s106, %s108
      %p115 = scmp.eq.s32.totalorder %s35, 1
      %p116 = por %p114, %p115
      %p117 = scmp.ne.s32.totalorder %s108, %s109
      %p118 = scmp.eq.s32.totalorder %s35, 0
      %p119 = por %p117, %p118
      %p120 = scmp.ne.s32.totalorder %s108, %s109
      %p121 = scmp.eq.s32.totalorder %s36, 1
      %p122 = por %p120, %p121
      %p124 = scmp.ne.s32.totalorder %s109, %s123
      %p125 = scmp.eq.s32.totalorder %s36, 0
      %p126 = por %p124, %p125
      %s128 = sadd.s32 %s127, 1
      %p131 = scmp.eq.s32.totalorder %s30, 1
      %p132 = scmp.ne.s32.totalorder %s127, %s129
      %p133 = scmp.eq.s32.totalorder %s30, 0
      %p134 = por %p132, %p133
      %p135 = scmp.ne.s32.totalorder %s127, %s129
      %p136 = scmp.eq.s32.totalorder %s35, 1
      %p137 = por %p135, %p136
      %p138 = scmp.ne.s32.totalorder %s129, %s130
      %p139 = scmp.eq.s32.totalorder %s35, 0
      %p140 = por %p138, %p139
      %p141 = scmp.ne.s32.totalorder %s129, %s130
      %p142 = scmp.eq.s32.totalorder %s36, 1
      %p143 = por %p141, %p142
      %p145 = scmp.ne.s32.totalorder %s130, %s144
      %p146 = scmp.eq.s32.totalorder %s36, 0
      %p147 = por %p145, %p146
      %s149 = sadd.s32 %s148, 1
      %p152 = scmp.eq.s32.totalorder %s30, 1
      %p153 = scmp.ne.s32.totalorder %s148, %s150
      %p154 = scmp.eq.s32.totalorder %s30, 0
      %p155 = por %p153, %p154
      %p156 = scmp.ne.s32.totalorder %s148, %s150
      %p157 = scmp.eq.s32.totalorder %s35, 1
      %p158 = por %p156, %p157
      %p159 = scmp.ne.s32.totalorder %s150, %s151
      %p160 = scmp.eq.s32.totalorder %s35, 0
      %p161 = por %p159, %p160
      %p162 = scmp.ne.s32.totalorder %s150, %s151
      %p163 = scmp.eq.s32.totalorder %s36, 1
      %p164 = por %p162, %p163
      %p166 = scmp.ne.s32.totalorder %s151, %s165
      %p167 = scmp.eq.s32.totalorder %s36, 0
      %p168 = por %p166, %p167
      %s170 = sadd.s32 %s169, 1
      %p173 = scmp.eq.s32.totalorder %s30, 1
      %p174 = scmp.ne.s32.totalorder %s169, %s171
      %p175 = scmp.eq.s32.totalorder %s30, 0
      %p176 = por %p174, %p175
      %p177 = scmp.ne.s32.totalorder %s169, %s171
      %p178 = scmp.eq.s32.totalorder %s35, 1
      %p179 = por %p177, %p178
      %p180 = scmp.ne.s32.totalorder %s171, %s172
      %p181 = scmp.eq.s32.totalorder %s35, 0
      %p182 = por %p180, %p181
      %p183 = scmp.ne.s32.totalorder %s171, %s172
      %p184 = scmp.eq.s32.totalorder %s36, 1
      %p185 = por %p183, %p184
      %p187 = scmp.ne.s32.totalorder %s172, %s186
      %p188 = scmp.eq.s32.totalorder %s36, 0
      %p189 = por %p187, %p188
      %s191 = sadd.s32 %s190, 1
      %p194 = scmp.eq.s32.totalorder %s30, 1
      %p195 = scmp.ne.s32.totalorder %s190, %s192
      %p196 = scmp.eq.s32.totalorder %s30, 0
      %p197 = por %p195, %p196
      %p198 = scmp.ne.s32.totalorder %s190, %s192
      %p199 = scmp.eq.s32.totalorder %s35, 1
      %p200 = por %p198, %p199
      %p201 = scmp.ne.s32.totalorder %s192, %s193
      %p202 = scmp.eq.s32.totalorder %s35, 0
      %p203 = por %p201, %p202
      %p204 = scmp.ne.s32.totalorder %s192, %s193
      %p205 = scmp.eq.s32.totalorder %s36, 1
      %p206 = por %p204, %p205
      %p208 = scmp.ne.s32.totalorder %s193, %s207
      %p209 = scmp.eq.s32.totalorder %s36, 0
      %p210 = por %p208, %p209
      %s212 = sadd.s32 %s211, 1
      %p215 = scmp.eq.s32.totalorder %s30, 1
      %p216 = scmp.ne.s32.totalorder %s211, %s213
      %p217 = scmp.eq.s32.totalorder %s30, 0
      %p218 = por %p216, %p217
      %p219 = scmp.ne.s32.totalorder %s211, %s213
      %p220 = scmp.eq.s32.totalorder %s35, 1
      %p221 = por %p219, %p220
      %p222 = scmp.ne.s32.totalorder %s213, %s214
      %p223 = scmp.eq.s32.totalorder %s35, 0
      %p224 = por %p222, %p223
      %p225 = scmp.ne.s32.totalorder %s213, %s214
      %p226 = scmp.eq.s32.totalorder %s36, 1
      %p227 = por %p225, %p226
      %p229 = scmp.ne.s32.totalorder %s214, %s228
      %p230 = scmp.eq.s32.totalorder %s36, 0
      %p231 = por %p229, %p230
      %s233 = sadd.s32 %s232, 1
      %p236 = scmp.eq.s32.totalorder %s30, 1
      %p237 = scmp.ne.s32.totalorder %s232, %s234
      %p238 = scmp.eq.s32.totalorder %s30, 0
      %p239 = por %p237, %p238
      %p240 = scmp.ne.s32.totalorder %s232, %s234
      %p241 = scmp.eq.s32.totalorder %s35, 1
      %p242 = por %p240, %p241
      %p243 = scmp.ne.s32.totalorder %s234, %s235
      %p244 = scmp.eq.s32.totalorder %s35, 0
      %p245 = por %p243, %p244
      %p246 = scmp.ne.s32.totalorder %s234, %s235
      %p247 = scmp.eq.s32.totalorder %s36, 1
      %p248 = por %p246, %p247
      %p250 = scmp.ne.s32.totalorder %s235, %s249
      %p251 = scmp.eq.s32.totalorder %s36, 0
      %p252 = por %p250, %p251
      %s254 = sadd.s32 %s253, 1
      %p257 = scmp.eq.s32.totalorder %s30, 1
      %p258 = scmp.ne.s32.totalorder %s253, %s255
      %p259 = scmp.eq.s32.totalorder %s30, 0
      %p260 = por %p258, %p259
      %p261 = scmp.ne.s32.totalorder %s253, %s255
      %p262 = scmp.eq.s32.totalorder %s35, 1
      %p263 = por %p261, %p262
      %p264 = scmp.ne.s32.totalorder %s255, %s256
      %p265 = scmp.eq.s32.totalorder %s35, 0
      %p266 = por %p264, %p265
      %p267 = scmp.ne.s32.totalorder %s255, %s256
      %p268 = scmp.eq.s32.totalorder %s36, 1
      %p269 = por %p267, %p268
      %p271 = scmp.ne.s32.totalorder %s256, %s270
      %p272 = scmp.eq.s32.totalorder %s36, 0
      %p273 = por %p271, %p272
      %s275 = sadd.s32 %s274, 1
      %p278 = scmp.eq.s32.totalorder %s30, 1
      %p279 = scmp.ne.s32.totalorder %s274, %s276
      %p280 = scmp.eq.s32.totalorder %s30, 0
      %p281 = por %p279, %p280
      %p282 = scmp.ne.s32.totalorder %s274, %s276
      %p283 = scmp.eq.s32.totalorder %s35, 1
      %p284 = por %p282, %p283
      %p285 = scmp.ne.s32.totalorder %s276, %s277
      %p286 = scmp.eq.s32.totalorder %s35, 0
      %p287 = por %p285, %p286
      %p288 = scmp.ne.s32.totalorder %s276, %s277
      %p289 = scmp.eq.s32.totalorder %s36, 1
      %p290 = por %p288, %p289
      %p292 = scmp.ne.s32.totalorder %s277, %s291
      %p293 = scmp.eq.s32.totalorder %s36, 0
      %p294 = por %p292, %p293
      %s296 = sadd.s32 %s295, 1
      %p299 = scmp.eq.s32.totalorder %s30, 1
      %p300 = scmp.ne.s32.totalorder %s295, %s297
      %p301 = scmp.eq.s32.totalorder %s30, 0
      %p302 = por %p300, %p301
      %p303 = scmp.ne.s32.totalorder %s295, %s297
      %p304 = scmp.eq.s32.totalorder %s35, 1
      %p305 = por %p303, %p304
      %p306 = scmp.ne.s32.totalorder %s297, %s298
      %p307 = scmp.eq.s32.totalorder %s35, 0
      %p308 = por %p306, %p307
      %p309 = scmp.ne.s32.totalorder %s297, %s298
      %p310 = scmp.eq.s32.totalorder %s36, 1
      %p311 = por %p309, %p310
      %p313 = scmp.ne.s32.totalorder %s298, %s312
      %p314 = scmp.eq.s32.totalorder %s36, 0
      %p315 = por %p313, %p314
      %s317 = sadd.s32 %s316, 1
      %p320 = scmp.eq.s32.totalorder %s30, 1
      %p321 = scmp.ne.s32.totalorder %s316, %s318
      %p322 = scmp.eq.s32.totalorder %s30, 0
      %p323 = por %p321, %p322
      %p324 = scmp.ne.s32.totalorder %s316, %s318
      %p325 = scmp.eq.s32.totalorder %s35, 1
      %p326 = por %p324, %p325
      %p327 = scmp.ne.s32.totalorder %s318, %s319
      %p328 = scmp.eq.s32.totalorder %s35, 0
      %p329 = por %p327, %p328
      %p330 = scmp.ne.s32.totalorder %s318, %s319
      %p331 = scmp.eq.s32.totalorder %s36, 1
      %p332 = por %p330, %p331
      %p334 = scmp.ne.s32.totalorder %s319, %s333
      %p335 = scmp.eq.s32.totalorder %s36, 0
      %p336 = por %p334, %p335
      %s338 = sadd.s32 %s337, 1
      %p341 = scmp.eq.s32.totalorder %s30, 1
      %p342 = scmp.ne.s32.totalorder %s337, %s339
      %p343 = scmp.eq.s32.totalorder %s30, 0
      %p344 = por %p342, %p343
      %p345 = scmp.ne.s32.totalorder %s337, %s339
      %p346 = scmp.eq.s32.totalorder %s35, 1
      %p347 = por %p345, %p346
      %p348 = scmp.ne.s32.totalorder %s339, %s340
      %p349 = scmp.eq.s32.totalorder %s35, 0
      %p350 = por %p348, %p349
      %p351 = scmp.ne.s32.totalorder %s339, %s340
      %p352 = scmp.eq.s32.totalorder %s36, 1
      %p353 = por %p351, %p352
      %p355 = scmp.ne.s32.totalorder %s340, %s354
      %p356 = scmp.eq.s32.totalorder %s36, 0
      %p357 = por %p355, %p356
      %s359 = sadd.s32 %s358, 1
      %p362 = scmp.eq.s32.totalorder %s30, 1
      %p363 = scmp.ne.s32.totalorder %s358, %s360
      %p364 = scmp.eq.s32.totalorder %s30, 0
      %p365 = por %p363, %p364
      %p366 = scmp.ne.s32.totalorder %s358, %s360
      %p367 = scmp.eq.s32.totalorder %s35, 1
      %p368 = por %p366, %p367
      %p369 = scmp.ne.s32.totalorder %s360, %s361
      %p370 = scmp.eq.s32.totalorder %s35, 0
      %p371 = por %p369, %p370
      %p372 = scmp.ne.s32.totalorder %s360, %s361
      %p373 = scmp.eq.s32.totalorder %s36, 1
      %p374 = por %p372, %p373
      %p376 = scmp.ne.s32.totalorder %s361, %s375
      %p377 = scmp.eq.s32.totalorder %s36, 0
      %p378 = por %p376, %p377
      %s379 = ssub.s32 %s30, %s37
      %p380 = scmp.eq.s32.totalorder %s379, 0
      %s382 = sadd.s32 %s381, 1
      %s383 = scalar_select %p380, %s381, %s382
      %p386 = pneg %p380
      %p387 = scmp.eq.s32.totalorder %s30, 1
      %p388 = por %p386, %p387
      %p389 = scmp.ne.s32.totalorder %s381, %s384
      %p390 = scmp.eq.s32.totalorder %s30, 0
      %p391 = por %p389, %p390
      %p392 = scmp.ne.s32.totalorder %s381, %s384
      %p393 = scmp.eq.s32.totalorder %s35, 1
      %p394 = por %p392, %p393
      %p395 = scmp.ne.s32.totalorder %s384, %s385
      %p396 = scmp.eq.s32.totalorder %s35, 0
      %p397 = por %p395, %p396
      %p398 = scmp.ne.s32.totalorder %s384, %s385
      %p399 = scmp.eq.s32.totalorder %s36, 1
      %p400 = por %p398, %p399
      %p402 = scmp.ne.s32.totalorder %s385, %s401
      %p403 = scmp.eq.s32.totalorder %s36, 0
      %p404 = por %p402, %p403
      %p405 = scmp.le.s32.totalorder 1, %s30
      %p406 = scmp.lt.s32.totalorder %s30, 3
      %p407 = pnand %p405, %p406
      %p408 = pneg %p407
      // Predicated region
      $region9: #{tpu_custom_call.1} parent=5 // pred_check
        _
      $region10: #{tpu_custom_call.1} parent=5 // pred_check_branch
        %410 = sbr.rel (%p407) target = $region12
      $region11: #{tpu_custom_call.1} parent=5 // pred_region
        %s411 = ssub.s32 %s30, 1
        // Predicated region
        $region13: #{tpu_custom_call.1} parent=11 // pred_check
          %p412 = pneg %p77
        $region14: #{tpu_custom_call.1} parent=11 // pred_check_branch
          %414 = sbr.rel (%p412) target = $region16
        $region15: #{tpu_custom_call.1} parent=11 // pred_region
          %416 = vsyncadd [#allocation5], 0
          %s418 = sshll.u32 %s1, 4
          %s419 = int_to_ptr.hbm [resolvable:$true] %s418
          %s420 = sshll.u32 [#allocation4], 4
          %s421 = int_to_ptr.vmem [resolvable:$true] %s420
          %423 = dma.hbm_to_vmem [thread:$0]  %s419, 128, %s421, [#allocation5]
        $region16: #{tpu_custom_call.1} parent=11 // pred_fallthru
          _
        // Predicated region
        $region17: #{tpu_custom_call.1} parent=11 // pred_check
          %p424 = pneg %p98
        $region18: #{tpu_custom_call.1} parent=11 // pred_check_branch
          %426 = sbr.rel (%p424) target = $region20
        $region19: #{tpu_custom_call.1} parent=11 // pred_region
          _
        $region20: #{tpu_custom_call.1} parent=11 // pred_fallthru
          _
        // Predicated region
        $region21: #{tpu_custom_call.1} parent=11 // pred_check
          %p427 = pneg %p119
        $region22: #{tpu_custom_call.1} parent=11 // pred_check_branch
          %429 = sbr.rel (%p427) target = $region24
        $region23: #{tpu_custom_call.1} parent=11 // pred_region
          %431 = vsyncadd [#allocation8], 0
          %s433 = sshll.u32 %s3, 4
          %s434 = int_to_ptr.hbm [resolvable:$true] %s433
          %s435 = sshll.u32 [#allocation7], 4
          %s436 = int_to_ptr.vmem [resolvable:$true] %s435
          %438 = dma.hbm_to_vmem [thread:$0]  %s434, 48, %s436, [#allocation8]
        $region24: #{tpu_custom_call.1} parent=11 // pred_fallthru
          _
        // Predicated region
        $region25: #{tpu_custom_call.1} parent=11 // pred_check
          %p439 = pneg %p140
        $region26: #{tpu_custom_call.1} parent=11 // pred_check_branch
          %441 = sbr.rel (%p439) target = $region28
        $region27: #{tpu_custom_call.1} parent=11 // pred_region
          %443 = vsyncadd [#allocation8], 0
          %s445 = sshll.u32 %s4, 4
          %s446 = int_to_ptr.hbm [resolvable:$true] %s445
          %s447 = sshll.u32 [#allocation9], 4
          %s448 = int_to_ptr.vmem [resolvable:$true] %s447
          %450 = dma.hbm_to_vmem [thread:$0]  %s446, 64, %s448, [#allocation8]
        $region28: #{tpu_custom_call.1} parent=11 // pred_fallthru
          _
        // Predicated region
        $region29: #{tpu_custom_call.1} parent=11 // pred_check
          %p451 = pneg %p161
        $region30: #{tpu_custom_call.1} parent=11 // pred_check_branch
          %453 = sbr.rel (%p451) target = $region32
        $region31: #{tpu_custom_call.1} parent=11 // pred_region
          _
        $region32: #{tpu_custom_call.1} parent=11 // pred_fallthru
          _
        // Predicated region
        $region33: #{tpu_custom_call.1} parent=11 // pred_check
          %p454 = pneg %p182
        $region34: #{tpu_custom_call.1} parent=11 // pred_check_branch
          %456 = sbr.rel (%p454) target = $region36
        $region35: #{tpu_custom_call.1} parent=11 // pred_region
          %458 = vsyncadd [#allocation11], 0
          %s459 = sshll.u32 %s6, 4
          %s460 = int_to_ptr.hbm [resolvable:$true] %s459
          %s461 = sshll.u32 [#allocation10], 4
          %s462 = int_to_ptr.vmem [resolvable:$true] %s461
          %467 = dma.hbm_to_vmem [thread:$0]  %s460, 8192, %s462, [#allocation11], 128, 128, 8
        $region36: #{tpu_custom_call.1} parent=11 // pred_fallthru
          _
        // Predicated region
        $region37: #{tpu_custom_call.1} parent=11 // pred_check
          %p468 = pneg %p203
        $region38: #{tpu_custom_call.1} parent=11 // pred_check_branch
          %470 = sbr.rel (%p468) target = $region40
        $region39: #{tpu_custom_call.1} parent=11 // pred_region
          %472 = vsyncadd [#allocation11], 0
          %s474 = sshll.u32 %s7, 4
          %s475 = int_to_ptr.hbm [resolvable:$true] %s474
          %s476 = sshll.u32 [#allocation12], 4
          %s477 = int_to_ptr.vmem [resolvable:$true] %s476
          %479 = dma.hbm_to_vmem [thread:$0]  %s475, 32, %s477, [#allocation11]
        $region40: #{tpu_custom_call.1} parent=11 // pred_fallthru
          _
        // Predicated region
        $region41: #{tpu_custom_call.1} parent=11 // pred_check
          %p480 = pneg %p224
        $region42: #{tpu_custom_call.1} parent=11 // pred_check_branch
          %482 = sbr.rel (%p480) target = $region44
        $region43: #{tpu_custom_call.1} parent=11 // pred_region
          %484 = vsyncadd [#allocation14], 0
          %s485 = sshll.u32 %s8, 4
          %s486 = int_to_ptr.hbm [resolvable:$true] %s485
          %s487 = sshll.u32 [#allocation13], 4
          %s488 = int_to_ptr.vmem [resolvable:$true] %s487
          %493 = dma.hbm_to_vmem [thread:$0]  %s486, 2048, %s488, [#allocation14], 64, 64, 4
        $region44: #{tpu_custom_call.1} parent=11 // pred_fallthru
          _
        // Predicated region
        $region45: #{tpu_custom_call.1} parent=11 // pred_check
          %p494 = pneg %p245
        $region46: #{tpu_custom_call.1} parent=11 // pred_check_branch
          %496 = sbr.rel (%p494) target = $region48
        $region47: #{tpu_custom_call.1} parent=11 // pred_region
          _
        $region48: #{tpu_custom_call.1} parent=11 // pred_fallthru
          _
        // Predicated region
        $region49: #{tpu_custom_call.1} parent=11 // pred_check
          %p497 = pneg %p266
        $region50: #{tpu_custom_call.1} parent=11 // pred_check_branch
          %499 = sbr.rel (%p497) target = $region52
        $region51: #{tpu_custom_call.1} parent=11 // pred_region
          _
        $region52: #{tpu_custom_call.1} parent=11 // pred_fallthru
          _
        // Predicated region
        $region53: #{tpu_custom_call.1} parent=11 // pred_check
          %p500 = pneg %p287
        $region54: #{tpu_custom_call.1} parent=11 // pred_check_branch
          %502 = sbr.rel (%p500) target = $region56
        $region55: #{tpu_custom_call.1} parent=11 // pred_region
          _
        $region56: #{tpu_custom_call.1} parent=11 // pred_fallthru
          _
        // Predicated region
        $region57: #{tpu_custom_call.1} parent=11 // pred_check
          %p503 = pneg %p308
        $region58: #{tpu_custom_call.1} parent=11 // pred_check_branch
          %505 = sbr.rel (%p503) target = $region60
        $region59: #{tpu_custom_call.1} parent=11 // pred_region
          %507 = vsyncadd [#allocation14], 0
          %s508 = sshll.u32 %s12, 4
          %s509 = int_to_ptr.hbm [resolvable:$true] %s508
          %s510 = sshll.u32 [#allocation15], 4
          %s511 = int_to_ptr.vmem [resolvable:$true] %s510
          %516 = dma.hbm_to_vmem [thread:$0]  %s509, 3072, %s511, [#allocation14], 192, 192, 12
        $region60: #{tpu_custom_call.1} parent=11 // pred_fallthru
          _
        // Predicated region
        $region61: #{tpu_custom_call.1} parent=11 // pred_check
          %p517 = pneg %p329
        $region62: #{tpu_custom_call.1} parent=11 // pred_check_branch
          %519 = sbr.rel (%p517) target = $region64
        $region63: #{tpu_custom_call.1} parent=11 // pred_region
          _
        $region64: #{tpu_custom_call.1} parent=11 // pred_fallthru
          _
        // Predicated region
        $region65: #{tpu_custom_call.1} parent=11 // pred_check
          %p520 = pneg %p350
        $region66: #{tpu_custom_call.1} parent=11 // pred_check_branch
          %522 = sbr.rel (%p520) target = $region68
        $region67: #{tpu_custom_call.1} parent=11 // pred_region
          %524 = vsyncadd [#allocation17], 0
          %s525 = sshll.u32 %s14, 4
          %s526 = int_to_ptr.hbm [resolvable:$true] %s525
          %s527 = sshll.u32 [#allocation16], 4
          %s528 = int_to_ptr.vmem [resolvable:$true] %s527
          %533 = dma.hbm_to_vmem [thread:$0]  %s526, 1024, %s528, [#allocation17], 64, 64, 4
        $region68: #{tpu_custom_call.1} parent=11 // pred_fallthru
          _
        // Predicated region
        $region69: #{tpu_custom_call.1} parent=11 // pred_check
          %p534 = pneg %p371
        $region70: #{tpu_custom_call.1} parent=11 // pred_check_branch
          %536 = sbr.rel (%p534) target = $region72
        $region71: #{tpu_custom_call.1} parent=11 // pred_region
          _
        $region72: #{tpu_custom_call.1} parent=11 // pred_fallthru
          _
      $region12: #{tpu_custom_call.1} parent=5 // pred_fallthru
        _
      %p537 = scmp.lt.s32.totalorder %s30, 2
      // Predicated region
      $region73: #{tpu_custom_call.1} parent=5 // pred_check
        %p538 = pneg %p537
      $region74: #{tpu_custom_call.1} parent=5 // pred_check_branch
        %540 = sbr.rel (%p538) target = $region76
      $region75: #{tpu_custom_call.1} parent=5 // pred_region
        // Predicated region
        $region77: #{tpu_custom_call.1} parent=75 // pred_check
          %p541 = pneg %p50
        $region78: #{tpu_custom_call.1} parent=75 // pred_check_branch
          %543 = sbr.rel (%p541) target = $region80
        $region79: #{tpu_custom_call.1} parent=75 // pred_region
          %p544 = scmp.lt.s32.totalorder %s30, 1
          %s545 = scalar_select %p544, %s30, 1
          %s546 = smul.addr %s545, 8
          %s547 = scalar_lea.vmem %s0, %s546
        $region80: #{tpu_custom_call.1} parent=75 // pred_fallthru
          _
      $region76: #{tpu_custom_call.1} parent=5 // pred_fallthru
        _
      %p548 = scmp.le.s32.totalorder 1, %s30
      %p549 = scmp.lt.s32.totalorder %s30, 3
      %p550 = pnand %p548, %p549
      %p551 = pneg %p550
      // Predicated region
      $region81: #{tpu_custom_call.1} parent=5 // pred_check
        _
      $region82: #{tpu_custom_call.1} parent=5 // pred_check_branch
        %553 = sbr.rel (%p550) target = $region84
      $region83: #{tpu_custom_call.1} parent=5 // pred_region
        %s554 = ssub.s32 %s30, 1
        // Predicated region
        $region85: #{tpu_custom_call.1} parent=83 // pred_check
          %p555 = pneg %p77
        $region86: #{tpu_custom_call.1} parent=83 // pred_check_branch
          %557 = sbr.rel (%p555) target = $region88
        $region87: #{tpu_custom_call.1} parent=83 // pred_region
          %559 = dma.done [#allocation5], 128
        $region88: #{tpu_custom_call.1} parent=83 // pred_fallthru
          _
        // Predicated region
        $region89: #{tpu_custom_call.1} parent=83 // pred_check
          %p560 = pneg %p119
        $region90: #{tpu_custom_call.1} parent=83 // pred_check_branch
          %562 = sbr.rel (%p560) target = $region92
        $region91: #{tpu_custom_call.1} parent=83 // pred_region
          %564 = dma.done [#allocation8], 48
        $region92: #{tpu_custom_call.1} parent=83 // pred_fallthru
          _
        // Predicated region
        $region93: #{tpu_custom_call.1} parent=83 // pred_check
          %p565 = pneg %p140
        $region94: #{tpu_custom_call.1} parent=83 // pred_check_branch
          %567 = sbr.rel (%p565) target = $region96
        $region95: #{tpu_custom_call.1} parent=83 // pred_region
          %569 = dma.done [#allocation8], 64
        $region96: #{tpu_custom_call.1} parent=83 // pred_fallthru
          _
        // Predicated region
        $region97: #{tpu_custom_call.1} parent=83 // pred_check
          %p570 = pneg %p182
        $region98: #{tpu_custom_call.1} parent=83 // pred_check_branch
          %572 = sbr.rel (%p570) target = $region100
        $region99: #{tpu_custom_call.1} parent=83 // pred_region
          %574 = dma.done [#allocation11], 8192
        $region100: #{tpu_custom_call.1} parent=83 // pred_fallthru
          _
        // Predicated region
        $region101: #{tpu_custom_call.1} parent=83 // pred_check
          %p575 = pneg %p203
        $region102: #{tpu_custom_call.1} parent=83 // pred_check_branch
          %577 = sbr.rel (%p575) target = $region104
        $region103: #{tpu_custom_call.1} parent=83 // pred_region
          %579 = dma.done [#allocation11], 32
        $region104: #{tpu_custom_call.1} parent=83 // pred_fallthru
          _
        // Predicated region
        $region105: #{tpu_custom_call.1} parent=83 // pred_check
          %p580 = pneg %p224
        $region106: #{tpu_custom_call.1} parent=83 // pred_check_branch
          %582 = sbr.rel (%p580) target = $region108
        $region107: #{tpu_custom_call.1} parent=83 // pred_region
          %584 = dma.done [#allocation14], 2048
        $region108: #{tpu_custom_call.1} parent=83 // pred_fallthru
          _
        // Predicated region
        $region109: #{tpu_custom_call.1} parent=83 // pred_check
          %p585 = pneg %p308
        $region110: #{tpu_custom_call.1} parent=83 // pred_check_branch
          %587 = sbr.rel (%p585) target = $region112
        $region111: #{tpu_custom_call.1} parent=83 // pred_region
          %589 = dma.done [#allocation14], 3072
        $region112: #{tpu_custom_call.1} parent=83 // pred_fallthru
          _
        // Predicated region
        $region113: #{tpu_custom_call.1} parent=83 // pred_check
          %p590 = pneg %p350
        $region114: #{tpu_custom_call.1} parent=83 // pred_check_branch
          %592 = sbr.rel (%p590) target = $region116
        $region115: #{tpu_custom_call.1} parent=83 // pred_region
          %594 = dma.done [#allocation17], 1024
        $region116: #{tpu_custom_call.1} parent=83 // pred_fallthru
          _
        %p595 = scmp.lt.s32.totalorder %s35, 1
        %s596 = scalar_select %p595, %s35, 1
        %s597 = smul.addr %s596, 8
        %s598 = scalar_lea.vmem %s0, %s597
        %p599 = pneg %p56
        %p600 = pneg %p53
        %p601 = pneg %p77
        %p602 = pneg %p74
        %p603 = pneg %p98
        %p604 = pneg %p95
        %p605 = pneg %p119
        %p606 = pneg %p116
        %p607 = pneg %p140
        %p608 = pneg %p137
        %p609 = pneg %p161
        %p610 = pneg %p158
        %p611 = pneg %p182
        %p612 = pneg %p179
        %p613 = pneg %p203
        %p614 = pneg %p200
        %p615 = pneg %p224
        %p616 = pneg %p221
        %p617 = pneg %p245
        %p618 = pneg %p242
        %p619 = pneg %p266
        %p620 = pneg %p263
        %p621 = pneg %p287
        %p622 = pneg %p284
        %p623 = pneg %p308
        %p624 = pneg %p305
        %p625 = pneg %p329
        %p626 = pneg %p326
        %p627 = pneg %p350
        %p628 = pneg %p347
        %p629 = pneg %p371
        %p630 = pneg %p368
        %p631 = pneg %p397
        %p632 = pneg %p394
        %s633 = sand.u32 %s384, 1
        %s634 = scalar_lea.sflag [#allocation6], %s633
        %s635 = sand.u32 %s384, 1
        %s636 = smul.addr %s635, 8
        %s637 = scalar_lea.vmem [#allocation18], %s636
        %p638 = scmp.lt.s32.totalorder %s35, 1
        %s639 = scalar_select %p638, %s35, 1
        %s640 = smul.addr %s639, 8
        %s641 = scalar_lea.vmem %s0, %s640
        %v642 = vld [vmem:[%s641] sm:$0xff]
        %v643 = vld [vmem:[%s2] sm:$0xff]
        %v644 = vld [vmem:[%s2 + $0x8] sm:$0xff]
        %v645 = vld [vmem:[%s2 + $0x10] sm:$0xff]
        %v646 = vld [vmem:[#allocation7] sm:$0x7]
        %v648 = vperm.slane %v646, 0
        %v649 = vperm.slane %v646, 1
        %v650 = vperm.slane %v646, 2
        %vm654 = vcmask 64512
        %v656 = vsel %vm654, %v642, 0
        %658 = vmatpush.msra.mxu0 0.0
        %659 = vmatpush.msra.mxu0 0.0
        %660 = vmatpush.msra.mxu0 0.0
        %661 = vmatpush.msra.mxu0 0.0
        %662 = vmatpush.msra.mxu0 0.0
        %663 = vmatpush.msra.mxu0 0.0
        %664 = vmatpush.msra.mxu0 0.0
        %665 = vmatpush.msra.mxu0 0.0
        %666 = vmatpush.msra.mxu0 0.0
        %667 = vmatpush.msra.mxu0 0.0
        %668 = vmatpush.msra.mxu0 0.0
        %669 = vmatpush.msra.mxu0 0.0
        %670 = vmatpush.msra.mxu0 0.0
        %671 = vmatpush.msra.mxu0 0.0
        %672 = vmatpush.msra.mxu0 0.0
        %673 = vmatpush.msra.mxu0 %v643
        %674 = vmatmul.f32.gmra.mxu0 %v656
        %v675 = vpop.f32.mrf.mxu0
        %v676 = vadd.f32 %v648, %v675
        %677 = vdwg.mxu0
        %678 = vmatpush.msra.mxu0 0.0
        %679 = vmatpush.msra.mxu0 0.0
        %680 = vmatpush.msra.mxu0 0.0
        %681 = vmatpush.msra.mxu0 0.0
        %682 = vmatpush.msra.mxu0 0.0
        %683 = vmatpush.msra.mxu0 0.0
        %684 = vmatpush.msra.mxu0 0.0
        %685 = vmatpush.msra.mxu0 0.0
        %686 = vmatpush.msra.mxu0 0.0
        %687 = vmatpush.msra.mxu0 0.0
        %688 = vmatpush.msra.mxu0 0.0
        %689 = vmatpush.msra.mxu0 0.0
        %690 = vmatpush.msra.mxu0 0.0
        %691 = vmatpush.msra.mxu0 0.0
        %692 = vmatpush.msra.mxu0 0.0
        %693 = vmatpush.msra.mxu0 %v644
        %694 = vmatmul.f32.gmra.mxu0 %v656
        %v695 = vpop.f32.mrf.mxu0
        %v696 = vadd.f32 %v649, %v695
        %697 = vdwg.mxu0
        %698 = vmatpush.msra.mxu0 0.0
        %699 = vmatpush.msra.mxu0 0.0
        %700 = vmatpush.msra.mxu0 0.0
        %701 = vmatpush.msra.mxu0 0.0
        %702 = vmatpush.msra.mxu0 0.0
        %703 = vmatpush.msra.mxu0 0.0
        %704 = vmatpush.msra.mxu0 0.0
        %705 = vmatpush.msra.mxu0 0.0
        %706 = vmatpush.msra.mxu0 0.0
        %707 = vmatpush.msra.mxu0 0.0
        %708 = vmatpush.msra.mxu0 0.0
        %709 = vmatpush.msra.mxu0 0.0
        %710 = vmatpush.msra.mxu0 0.0
        %711 = vmatpush.msra.mxu0 0.0
        %712 = vmatpush.msra.mxu0 0.0
        %713 = vmatpush.msra.mxu0 %v645
        %714 = vmatmul.f32.gmra.mxu0 %v656
        %v715 = vpop.f32.mrf.mxu0
        %v716 = vadd.f32 %v650, %v715
        %717 = vdwg.mxu0
        %v718 = vld [vmem:[#allocation4] sm:$0xff]
        %v719 = vld [vmem:[#allocation9] sm:$0xf]
        %v720 = vld [vmem:[%s5] sm:$0xf]
        %v721 = vadd.f32 %v676, %v696
        %v722 = vadd.f32 %v721, %v716
        %v723 = vadd.f32 %v722, %v718
        %724 = vadd.xlane.f32.xlu0 %v723
        %v725 = vpop.xlane.xlu0 %724
        %v726 = vrcp.pop 512.0
        %v727 = vmul.f32 512.0, %v726
        %v728 = vsub.f32 1.0, %v727
        %v729 = vmul.f32 %v726, %v728
        %v730 = vadd.f32 %v726, %v729
        %vm731 = vweird.f32 %v726
        %v732 = vsel %vm731, %v726, %v730
        %v733 = vmul.f32 %v725, %v732
        %v734 = vsub.f32 %v676, %v733
        %v735 = vsub.f32 %v696, %v733
        %v736 = vsub.f32 %v716, %v733
        %v737 = vsub.f32 %v718, %v733
        %v738 = vmul.f32 %v734, %v734
        %v739 = vmul.f32 %v735, %v735
        %v740 = vmul.f32 %v736, %v736
        %v741 = vmul.f32 %v737, %v737
        %v742 = vadd.f32 %v738, %v739
        %v743 = vadd.f32 %v742, %v740
        %v744 = vadd.f32 %v743, %v741
        %745 = vadd.xlane.f32.xlu0 %v744
        %v746 = vpop.xlane.xlu0 %745
        %v747 = vmul.f32 %v746, %v732
        %v748 = vadd.f32 %v747, 1e-05
        %v749 = vrsqrt.pop %v748
        %v750 = vmul.f32 %v749, %v748
        %v751 = vmul.f32 %v750, %v749
        %v752 = vmul.f32 0.5, %v751
        %v753 = vsub.f32 1.5, %v752
        %v754 = vmul.f32 %v749, %v753
        %vm755 = vweird.f32 %v748
        %vm756 = vweird.f32 %v749
        %vm757 = vmor %vm755, %vm756
        %v758 = vsel %vm757, %v749, %v754
        %v759 = vmul.f32 %v734, %v758
        %v760 = vmul.f32 %v735, %v758
        %v761 = vmul.f32 %v736, %v758
        %v762 = vmul.f32 %v737, %v758
        %v764 = vperm.slane %v719, 0
        %v765 = vperm.slane %v719, 1
        %v766 = vperm.slane %v719, 2
        %v767 = vperm.slane %v719, 3
        %v772 = vmul.f32 %v759, %v764
        %v773 = vmul.f32 %v760, %v765
        %v774 = vmul.f32 %v761, %v766
        %v775 = vmul.f32 %v762, %v767
        %v777 = vperm.slane %v720, 0
        %v778 = vperm.slane %v720, 1
        %v779 = vperm.slane %v720, 2
        %v780 = vperm.slane %v720, 3
        %v785 = vadd.f32 %v772, %v777
        %v786 = vadd.f32 %v773, %v778
        %v787 = vadd.f32 %v774, %v779
        %v788 = vadd.f32 %v775, %v780
        %v789 = vpack.c.bf16 %v785, %v785
        %v790 = vpack.c.bf16 %v786, %v786
        %v791 = vpack.c.bf16 %v787, %v787
        %v792 = vpack.c.bf16 %v788, %v788
        %v793 = vld [vmem:[#allocation10] sm:$0xff]
        %v794 = vld [vmem:[#allocation10 + $0x8] sm:$0xff]
        %v795 = vld [vmem:[#allocation10 + $0x10] sm:$0xff]
        %v796 = vld [vmem:[#allocation10 + $0x18] sm:$0xff]
        %v797 = vld [vmem:[#allocation10 + $0x20] sm:$0xff]
        %v798 = vld [vmem:[#allocation10 + $0x28] sm:$0xff]
        %v799 = vld [vmem:[#allocation10 + $0x30] sm:$0xff]
        %v800 = vld [vmem:[#allocation10 + $0x38] sm:$0xff]
        %v801 = vld [vmem:[#allocation10 + $0x40] sm:$0xff]
        %v802 = vld [vmem:[#allocation10 + $0x48] sm:$0xff]
        %v803 = vld [vmem:[#allocation10 + $0x50] sm:$0xff]
        %v804 = vld [vmem:[#allocation10 + $0x58] sm:$0xff]
        %v805 = vld [vmem:[#allocation10 + $0x60] sm:$0xff]
        %v806 = vld [vmem:[#allocation10 + $0x68] sm:$0xff]
        %v807 = vld [vmem:[#allocation10 + $0x70] sm:$0xff]
        %v808 = vld [vmem:[#allocation10 + $0x78] sm:$0xff]
        %v809 = vld [vmem:[#allocation10 + $0x80] sm:$0xff]
        %v810 = vld [vmem:[#allocation10 + $0x88] sm:$0xff]
        %v811 = vld [vmem:[#allocation10 + $0x90] sm:$0xff]
        %v812 = vld [vmem:[#allocation10 + $0x98] sm:$0xff]
        %v813 = vld [vmem:[#allocation10 + $0xa0] sm:$0xff]
        %v814 = vld [vmem:[#allocation10 + $0xa8] sm:$0xff]
        %v815 = vld [vmem:[#allocation10 + $0xb0] sm:$0xff]
        %v816 = vld [vmem:[#allocation10 + $0xb8] sm:$0xff]
        %v817 = vld [vmem:[#allocation10 + $0xc0] sm:$0xff]
        %v818 = vld [vmem:[#allocation10 + $0xc8] sm:$0xff]
        %v819 = vld [vmem:[#allocation10 + $0xd0] sm:$0xff]
        %v820 = vld [vmem:[#allocation10 + $0xd8] sm:$0xff]
        %v821 = vld [vmem:[#allocation10 + $0xe0] sm:$0xff]
        %v822 = vld [vmem:[#allocation10 + $0xe8] sm:$0xff]
        %v823 = vld [vmem:[#allocation10 + $0xf0] sm:$0xff]
        %v824 = vld [vmem:[#allocation10 + $0xf8] sm:$0xff]
        %v825 = vld [vmem:[#allocation10 + $0x100] sm:$0xff]
        %v826 = vld [vmem:[#allocation10 + $0x108] sm:$0xff]
        %v827 = vld [vmem:[#allocation10 + $0x110] sm:$0xff]
        %v828 = vld [vmem:[#allocation10 + $0x118] sm:$0xff]
        %v829 = vld [vmem:[#allocation10 + $0x120] sm:$0xff]
        %v830 = vld [vmem:[#allocation10 + $0x128] sm:$0xff]
        %v831 = vld [vmem:[#allocation10 + $0x130] sm:$0xff]
        %v832 = vld [vmem:[#allocation10 + $0x138] sm:$0xff]
        %v833 = vld [vmem:[#allocation10 + $0x140] sm:$0xff]
        %v834 = vld [vmem:[#allocation10 + $0x148] sm:$0xff]
        %v835 = vld [vmem:[#allocation10 + $0x150] sm:$0xff]
        %v836 = vld [vmem:[#allocation10 + $0x158] sm:$0xff]
        %v837 = vld [vmem:[#allocation10 + $0x160] sm:$0xff]
        %v838 = vld [vmem:[#allocation10 + $0x168] sm:$0xff]
        %v839 = vld [vmem:[#allocation10 + $0x170] sm:$0xff]
        %v840 = vld [vmem:[#allocation10 + $0x178] sm:$0xff]
        %v841 = vld [vmem:[#allocation10 + $0x180] sm:$0xff]
        %v842 = vld [vmem:[#allocation10 + $0x188] sm:$0xff]
        %v843 = vld [vmem:[#allocation10 + $0x190] sm:$0xff]
        %v844 = vld [vmem:[#allocation10 + $0x198] sm:$0xff]
        %v845 = vld [vmem:[#allocation10 + $0x1a0] sm:$0xff]
        %v846 = vld [vmem:[#allocation10 + $0x1a8] sm:$0xff]
        %v847 = vld [vmem:[#allocation10 + $0x1b0] sm:$0xff]
        %v848 = vld [vmem:[#allocation10 + $0x1b8] sm:$0xff]
        %v849 = vld [vmem:[#allocation10 + $0x1c0] sm:$0xff]
        %v850 = vld [vmem:[#allocation10 + $0x1c8] sm:$0xff]
        %v851 = vld [vmem:[#allocation10 + $0x1d0] sm:$0xff]
        %v852 = vld [vmem:[#allocation10 + $0x1d8] sm:$0xff]
        %v853 = vld [vmem:[#allocation10 + $0x1e0] sm:$0xff]
        %v854 = vld [vmem:[#allocation10 + $0x1e8] sm:$0xff]
        %v855 = vld [vmem:[#allocation10 + $0x1f0] sm:$0xff]
        %v856 = vld [vmem:[#allocation10 + $0x1f8] sm:$0xff]
        %v857 = vld [vmem:[#allocation12] sm:$0x3]
        %v859 = vperm.slane %v857, 0
        %v860 = vperm.slane %v857, 1
        %v927 = vunpack.c.l.b16 %v793
        %v928 = vunpack.c.h.b16 %v793
        %v929 = vunpack.c.l.b16 %v794
        %v930 = vunpack.c.h.b16 %v794
        %v931 = vunpack.c.l.b16 %v795
        %v932 = vunpack.c.h.b16 %v795
        %v933 = vunpack.c.l.b16 %v796
        %v934 = vunpack.c.h.b16 %v796
        %v935 = vunpack.c.l.b16 %v797
        %v936 = vunpack.c.h.b16 %v797
        %v937 = vunpack.c.l.b16 %v798
        %v938 = vunpack.c.h.b16 %v798
        %v939 = vunpack.c.l.b16 %v799
        %v940 = vunpack.c.h.b16 %v799
        %v941 = vunpack.c.l.b16 %v800
        %v942 = vunpack.c.h.b16 %v800
        %v943 = vunpack.c.l.b16 %v801
        %v944 = vunpack.c.h.b16 %v801
        %v945 = vunpack.c.l.b16 %v802
        %v946 = vunpack.c.h.b16 %v802
        %v947 = vunpack.c.l.b16 %v803
        %v948 = vunpack.c.h.b16 %v803
        %v949 = vunpack.c.l.b16 %v804
        %v950 = vunpack.c.h.b16 %v804
        %v951 = vunpack.c.l.b16 %v805
        %v952 = vunpack.c.h.b16 %v805
        %v953 = vunpack.c.l.b16 %v806
        %v954 = vunpack.c.h.b16 %v806
        %v955 = vunpack.c.l.b16 %v807
        %v956 = vunpack.c.h.b16 %v807
        %v957 = vunpack.c.l.b16 %v808
        %v958 = vunpack.c.h.b16 %v808
        %v959 = vunpack.c.l.b16 %v809
        %v960 = vunpack.c.h.b16 %v809
        %v961 = vunpack.c.l.b16 %v810
        %v962 = vunpack.c.h.b16 %v810
        %v963 = vunpack.c.l.b16 %v811
        %v964 = vunpack.c.h.b16 %v811
        %v965 = vunpack.c.l.b16 %v812
        %v966 = vunpack.c.h.b16 %v812
        %v967 = vunpack.c.l.b16 %v813
        %v968 = vunpack.c.h.b16 %v813
        %v969 = vunpack.c.l.b16 %v814
        %v970 = vunpack.c.h.b16 %v814
        %v971 = vunpack.c.l.b16 %v815
        %v972 = vunpack.c.h.b16 %v815
        %v973 = vunpack.c.l.b16 %v816
        %v974 = vunpack.c.h.b16 %v816
        %v975 = vunpack.c.l.b16 %v817
        %v976 = vunpack.c.h.b16 %v817
        %v977 = vunpack.c.l.b16 %v818
        %v978 = vunpack.c.h.b16 %v818
        %v979 = vunpack.c.l.b16 %v819
        %v980 = vunpack.c.h.b16 %v819
        %v981 = vunpack.c.l.b16 %v820
        %v982 = vunpack.c.h.b16 %v820
        %v983 = vunpack.c.l.b16 %v821
        %v984 = vunpack.c.h.b16 %v821
        %v985 = vunpack.c.l.b16 %v822
        %v986 = vunpack.c.h.b16 %v822
        %v987 = vunpack.c.l.b16 %v823
        %v988 = vunpack.c.h.b16 %v823
        %v989 = vunpack.c.l.b16 %v824
        %v990 = vunpack.c.h.b16 %v824
        %v991 = vunpack.c.l.b16 %v825
        %v992 = vunpack.c.h.b16 %v825
        %v993 = vunpack.c.l.b16 %v826
        %v994 = vunpack.c.h.b16 %v826
        %v995 = vunpack.c.l.b16 %v827
        %v996 = vunpack.c.h.b16 %v827
        %v997 = vunpack.c.l.b16 %v828
        %v998 = vunpack.c.h.b16 %v828
        %v999 = vunpack.c.l.b16 %v829
        %v1000 = vunpack.c.h.b16 %v829
        %v1001 = vunpack.c.l.b16 %v830
        %v1002 = vunpack.c.h.b16 %v830
        %v1003 = vunpack.c.l.b16 %v831
        %v1004 = vunpack.c.h.b16 %v831
        %v1005 = vunpack.c.l.b16 %v832
        %v1006 = vunpack.c.h.b16 %v832
        %v1007 = vunpack.c.l.b16 %v833
        %v1008 = vunpack.c.h.b16 %v833
        %v1009 = vunpack.c.l.b16 %v834
        %v1010 = vunpack.c.h.b16 %v834
        %v1011 = vunpack.c.l.b16 %v835
        %v1012 = vunpack.c.h.b16 %v835
        %v1013 = vunpack.c.l.b16 %v836
        %v1014 = vunpack.c.h.b16 %v836
        %v1015 = vunpack.c.l.b16 %v837
        %v1016 = vunpack.c.h.b16 %v837
        %v1017 = vunpack.c.l.b16 %v838
        %v1018 = vunpack.c.h.b16 %v838
        %v1019 = vunpack.c.l.b16 %v839
        %v1020 = vunpack.c.h.b16 %v839
        %v1021 = vunpack.c.l.b16 %v840
        %v1022 = vunpack.c.h.b16 %v840
        %v1023 = vunpack.c.l.b16 %v841
        %v1024 = vunpack.c.h.b16 %v841
        %v1025 = vunpack.c.l.b16 %v842
        %v1026 = vunpack.c.h.b16 %v842
        %v1027 = vunpack.c.l.b16 %v843
        %v1028 = vunpack.c.h.b16 %v843
        %v1029 = vunpack.c.l.b16 %v844
        %v1030 = vunpack.c.h.b16 %v844
        %v1031 = vunpack.c.l.b16 %v845
        %v1032 = vunpack.c.h.b16 %v845
        %v1033 = vunpack.c.l.b16 %v846
        %v1034 = vunpack.c.h.b16 %v846
        %v1035 = vunpack.c.l.b16 %v847
        %v1036 = vunpack.c.h.b16 %v847
        %v1037 = vunpack.c.l.b16 %v848
        %v1038 = vunpack.c.h.b16 %v848
        %v1039 = vunpack.c.l.b16 %v849
        %v1040 = vunpack.c.h.b16 %v849
        %v1041 = vunpack.c.l.b16 %v850
        %v1042 = vunpack.c.h.b16 %v850
        %v1043 = vunpack.c.l.b16 %v851
        %v1044 = vunpack.c.h.b16 %v851
        %v1045 = vunpack.c.l.b16 %v852
        %v1046 = vunpack.c.h.b16 %v852
        %v1047 = vunpack.c.l.b16 %v853
        %v1048 = vunpack.c.h.b16 %v853
        %v1049 = vunpack.c.l.b16 %v854
        %v1050 = vunpack.c.h.b16 %v854
        %v1051 = vunpack.c.l.b16 %v855
        %v1052 = vunpack.c.h.b16 %v855
        %v1053 = vunpack.c.l.b16 %v856
        %v1054 = vunpack.c.h.b16 %v856
        %v1055 = vpack.c.b16 %v929, %v927
        %v1056 = vpack.c.b16 %v930, %v928
        %v1057 = vpack.c.b16 %v933, %v931
        %v1058 = vpack.c.b16 %v934, %v932
        %v1059 = vpack.c.b16 %v937, %v935
        %v1060 = vpack.c.b16 %v938, %v936
        %v1061 = vpack.c.b16 %v941, %v939
        %v1062 = vpack.c.b16 %v942, %v940
        %v1063 = vpack.c.b16 %v945, %v943
        %v1064 = vpack.c.b16 %v946, %v944
        %v1065 = vpack.c.b16 %v949, %v947
        %v1066 = vpack.c.b16 %v950, %v948
        %v1067 = vpack.c.b16 %v953, %v951
        %v1068 = vpack.c.b16 %v954, %v952
        %v1069 = vpack.c.b16 %v957, %v955
        %v1070 = vpack.c.b16 %v958, %v956
        %v1071 = vpack.c.b16 %v961, %v959
        %v1072 = vpack.c.b16 %v962, %v960
        %v1073 = vpack.c.b16 %v965, %v963
        %v1074 = vpack.c.b16 %v966, %v964
        %v1075 = vpack.c.b16 %v969, %v967
        %v1076 = vpack.c.b16 %v970, %v968
        %v1077 = vpack.c.b16 %v973, %v971
        %v1078 = vpack.c.b16 %v974, %v972
        %v1079 = vpack.c.b16 %v977, %v975
        %v1080 = vpack.c.b16 %v978, %v976
        %v1081 = vpack.c.b16 %v981, %v979
        %v1082 = vpack.c.b16 %v982, %v980
        %v1083 = vpack.c.b16 %v985, %v983
        %v1084 = vpack.c.b16 %v986, %v984
        %v1085 = vpack.c.b16 %v989, %v987
        %v1086 = vpack.c.b16 %v990, %v988
        %v1087 = vpack.c.b16 %v993, %v991
        %v1088 = vpack.c.b16 %v994, %v992
        %v1089 = vpack.c.b16 %v997, %v995
        %v1090 = vpack.c.b16 %v998, %v996
        %v1091 = vpack.c.b16 %v1001, %v999
        %v1092 = vpack.c.b16 %v1002, %v1000
        %v1093 = vpack.c.b16 %v1005, %v1003
        %v1094 = vpack.c.b16 %v1006, %v1004
        %v1095 = vpack.c.b16 %v1009, %v1007
        %v1096 = vpack.c.b16 %v1010, %v1008
        %v1097 = vpack.c.b16 %v1013, %v1011
        %v1098 = vpack.c.b16 %v1014, %v1012
        %v1099 = vpack.c.b16 %v1017, %v1015
        %v1100 = vpack.c.b16 %v1018, %v1016
        %v1101 = vpack.c.b16 %v1021, %v1019
        %v1102 = vpack.c.b16 %v1022, %v1020
        %v1103 = vpack.c.b16 %v1025, %v1023
        %v1104 = vpack.c.b16 %v1026, %v1024
        %v1105 = vpack.c.b16 %v1029, %v1027
        %v1106 = vpack.c.b16 %v1030, %v1028
        %v1107 = vpack.c.b16 %v1033, %v1031
        %v1108 = vpack.c.b16 %v1034, %v1032
        %v1109 = vpack.c.b16 %v1037, %v1035
        %v1110 = vpack.c.b16 %v1038, %v1036
        %v1111 = vpack.c.b16 %v1041, %v1039
        %v1112 = vpack.c.b16 %v1042, %v1040
        %v1113 = vpack.c.b16 %v1045, %v1043
        %v1114 = vpack.c.b16 %v1046, %v1044
        %v1115 = vpack.c.b16 %v1049, %v1047
        %v1116 = vpack.c.b16 %v1050, %v1048
        %v1117 = vpack.c.b16 %v1053, %v1051
        %v1118 = vpack.c.b16 %v1054, %v1052
        %1183 = vmatpush.bf16.msra.mxu0 %v1069
        %1184 = vmatpush.bf16.msra.mxu0 %v1067
        %1185 = vmatpush.bf16.msra.mxu0 %v1065
        %1186 = vmatpush.bf16.msra.mxu0 %v1063
        %1187 = vmatpush.bf16.msra.mxu0 %v1061
        %1188 = vmatpush.bf16.msra.mxu0 %v1059
        %1189 = vmatpush.bf16.msra.mxu0 %v1057
        %1190 = vmatpush.bf16.msra.mxu0 %v1055
        %1191 = vmatmul.bf16.gmra.mxu0 %v789
        %v1192 = vpop.f32.mrf.mxu0
        %v1193 = vadd.f32 %v859, %v1192
        %v1194 = vpop.f32.mrf.mxu0
        %1195 = vdwg.mxu0
        %1196 = vmatpush.bf16.msra.mxu0 %v1085
        %1197 = vmatpush.bf16.msra.mxu0 %v1083
        %1198 = vmatpush.bf16.msra.mxu0 %v1081
        %1199 = vmatpush.bf16.msra.mxu0 %v1079
        %1200 = vmatpush.bf16.msra.mxu0 %v1077
        %1201 = vmatpush.bf16.msra.mxu0 %v1075
        %1202 = vmatpush.bf16.msra.mxu0 %v1073
        %1203 = vmatpush.bf16.msra.mxu0 %v1071
        %1204 = vmatmul.bf16.gmra.mxu0 %v790
        %v1205 = vpop.f32.mrf.mxu0
        %v1206 = vadd.f32 %v1193, %v1205
        %v1207 = vpop.f32.mrf.mxu0
        %1208 = vdwg.mxu0
        %1209 = vmatpush.bf16.msra.mxu0 %v1101
        %1210 = vmatpush.bf16.msra.mxu0 %v1099
        %1211 = vmatpush.bf16.msra.mxu0 %v1097
        %1212 = vmatpush.bf16.msra.mxu0 %v1095
        %1213 = vmatpush.bf16.msra.mxu0 %v1093
        %1214 = vmatpush.bf16.msra.mxu0 %v1091
        %1215 = vmatpush.bf16.msra.mxu0 %v1089
        %1216 = vmatpush.bf16.msra.mxu0 %v1087
        %1217 = vmatmul.bf16.gmra.mxu0 %v791
        %v1218 = vpop.f32.mrf.mxu0
        %v1219 = vadd.f32 %v1206, %v1218
        %v1220 = vpop.f32.mrf.mxu0
        %1221 = vdwg.mxu0
        %1222 = vmatpush.bf16.msra.mxu0 %v1117
        %1223 = vmatpush.bf16.msra.mxu0 %v1115
        %1224 = vmatpush.bf16.msra.mxu0 %v1113
        %1225 = vmatpush.bf16.msra.mxu0 %v1111
        %1226 = vmatpush.bf16.msra.mxu0 %v1109
        %1227 = vmatpush.bf16.msra.mxu0 %v1107
        %1228 = vmatpush.bf16.msra.mxu0 %v1105
        %1229 = vmatpush.bf16.msra.mxu0 %v1103
        %1230 = vmatmul.bf16.gmra.mxu0 %v792
        %v1231 = vpop.f32.mrf.mxu0
        %v1232 = vadd.f32 %v1219, %v1231
        %v1233 = vpop.f32.mrf.mxu0
        %1234 = vdwg.mxu0
        %1235 = vmatpush.bf16.msra.mxu0 %v1070
        %1236 = vmatpush.bf16.msra.mxu0 %v1068
        %1237 = vmatpush.bf16.msra.mxu0 %v1066
        %1238 = vmatpush.bf16.msra.mxu0 %v1064
        %1239 = vmatpush.bf16.msra.mxu0 %v1062
        %1240 = vmatpush.bf16.msra.mxu0 %v1060
        %1241 = vmatpush.bf16.msra.mxu0 %v1058
        %1242 = vmatpush.bf16.msra.mxu0 %v1056
        %1243 = vmatmul.bf16.gmra.mxu0 %v789
        %v1244 = vpop.f32.mrf.mxu0
        %v1245 = vadd.f32 %v860, %v1244
        %v1246 = vpop.f32.mrf.mxu0
        %1247 = vdwg.mxu0
        %1248 = vmatpush.bf16.msra.mxu0 %v1086
        %1249 = vmatpush.bf16.msra.mxu0 %v1084
        %1250 = vmatpush.bf16.msra.mxu0 %v1082
        %1251 = vmatpush.bf16.msra.mxu0 %v1080
        %1252 = vmatpush.bf16.msra.mxu0 %v1078
        %1253 = vmatpush.bf16.msra.mxu0 %v1076
        %1254 = vmatpush.bf16.msra.mxu0 %v1074
        %1255 = vmatpush.bf16.msra.mxu0 %v1072
        %1256 = vmatmul.bf16.gmra.mxu0 %v790
        %v1257 = vpop.f32.mrf.mxu0
        %v1258 = vadd.f32 %v1245, %v1257
        %v1259 = vpop.f32.mrf.mxu0
        %1260 = vdwg.mxu0
        %1261 = vmatpush.bf16.msra.mxu0 %v1102
        %1262 = vmatpush.bf16.msra.mxu0 %v1100
        %1263 = vmatpush.bf16.msra.mxu0 %v1098
        %1264 = vmatpush.bf16.msra.mxu0 %v1096
        %1265 = vmatpush.bf16.msra.mxu0 %v1094
        %1266 = vmatpush.bf16.msra.mxu0 %v1092
        %1267 = vmatpush.bf16.msra.mxu0 %v1090
        %1268 = vmatpush.bf16.msra.mxu0 %v1088
        %1269 = vmatmul.bf16.gmra.mxu0 %v791
        %v1270 = vpop.f32.mrf.mxu0
        %v1271 = vadd.f32 %v1258, %v1270
        %v1272 = vpop.f32.mrf.mxu0
        %1273 = vdwg.mxu0
        %1274 = vmatpush.bf16.msra.mxu0 %v1118
        %1275 = vmatpush.bf16.msra.mxu0 %v1116
        %1276 = vmatpush.bf16.msra.mxu0 %v1114
        %1277 = vmatpush.bf16.msra.mxu0 %v1112
        %1278 = vmatpush.bf16.msra.mxu0 %v1110
        %1279 = vmatpush.bf16.msra.mxu0 %v1108
        %1280 = vmatpush.bf16.msra.mxu0 %v1106
        %1281 = vmatpush.bf16.msra.mxu0 %v1104
        %1282 = vmatmul.bf16.gmra.mxu0 %v792
        %v1283 = vpop.f32.mrf.mxu0
        %v1284 = vadd.f32 %v1271, %v1283
        %v1285 = vpop.f32.mrf.mxu0
        %1286 = vdwg.mxu0
        %v1287 = vmul.f32 %v1232, 0.5
        %v1288 = vmul.f32 %v1284, 0.5
        %v1289 = vmul.f32 %v1232, 0.70710677
        %v1290 = vmul.f32 %v1284, 0.70710677
        %v1291 = vand.u32 2147483647, %v1289
        %v1292 = vand.u32 2147483647, %v1290
        %v1293 = vmul.f32 %v1291, 0.3275911
        %v1294 = vmul.f32 %v1292, 0.3275911
        %v1295 = vadd.f32 %v1293, 1.0
        %v1296 = vadd.f32 %v1294, 1.0
        %v1297 = vrcp.pop %v1295
        %v1298 = vmul.f32 %v1295, %v1297
        %v1299 = vsub.f32 1.0, %v1298
        %v1300 = vmul.f32 %v1297, %v1299
        %v1301 = vadd.f32 %v1297, %v1300
        %vm1302 = vweird.f32 %v1295
        %vm1303 = vweird.f32 %v1297
        %vm1304 = vmor %vm1302, %vm1303
        %v1305 = vsel %vm1304, %v1297, %v1301
        %v1306 = vand.u32 2147483647, %v1295
        %vm1307 = vcmp.eq.f32.partialorder %v1306, 8.507059e+37
        %v1308 = vand.u32 %v1295, 2147483648
        %v1309 = vor.u32 1.1754944e-38, %v1308
        %v1310 = vsel %vm1307, %v1309, %v1305
        %v1311 = vmul.f32 1.0, %v1310
        %v1312 = vrcp.pop %v1296
        %v1313 = vmul.f32 %v1296, %v1312
        %v1314 = vsub.f32 1.0, %v1313
        %v1315 = vmul.f32 %v1312, %v1314
        %v1316 = vadd.f32 %v1312, %v1315
        %vm1317 = vweird.f32 %v1296
        %vm1318 = vweird.f32 %v1312
        %vm1319 = vmor %vm1317, %vm1318
        %v1320 = vsel %vm1319, %v1312, %v1316
        %v1321 = vand.u32 2147483647, %v1296
        %vm1322 = vcmp.eq.f32.partialorder %v1321, 8.507059e+37
        %v1323 = vand.u32 %v1296, 2147483648
        %v1324 = vor.u32 1.1754944e-38, %v1323
        %v1325 = vsel %vm1322, %v1324, %v1320
        %v1326 = vmul.f32 1.0, %v1325
        %v1327 = vmul.f32 %v1311, 1.0614054
        %v1328 = vmul.f32 %v1326, 1.0614054
        %v1329 = vadd.f32 %v1327, -1.4531521
        %v1330 = vadd.f32 %v1328, -1.4531521
        %v1331 = vmul.f32 %v1329, %v1311
        %v1332 = vmul.f32 %v1330, %v1326
        %v1333 = vadd.f32 %v1331, 1.4214138
        %v1334 = vadd.f32 %v1332, 1.4214138
        %v1335 = vmul.f32 %v1333, %v1311
        %v1336 = vmul.f32 %v1334, %v1326
        %v1337 = vadd.f32 %v1335, -0.28449672
        %v1338 = vadd.f32 %v1336, -0.28449672
        %v1339 = vmul.f32 %v1337, %v1311
        %v1340 = vmul.f32 %v1338, %v1326
        %v1341 = vadd.f32 %v1339, 0.2548296
        %v1342 = vadd.f32 %v1340, 0.2548296
        %v1343 = vmul.f32 %v1341, %v1311
        %v1344 = vmul.f32 %v1342, %v1326
        %v1345 = vsub.f32 0.0, %v1291
        %v1346 = vsub.f32 0.0, %v1292
        %v1347 = vmul.f32 %v1345, %v1291
        %v1348 = vmul.f32 %v1346, %v1292
        %v1349 = vmul.f32 %v1347, 1.442695
        %v1350 = vpow.pop %v1349
        %v1351 = vmul.f32 %v1348, 1.442695
        %v1352 = vpow.pop %v1351
        %v1353 = vmul.f32 %v1343, %v1350
        %v1354 = vmul.f32 %v1344, %v1352
        %v1355 = vsub.f32 1.0, %v1353
        %v1356 = vsub.f32 1.0, %v1354
        %vm1357 = vcmp.ge.f32.partialorder %v1289, 0.0
        %vm1358 = vcmp.ge.f32.partialorder %v1290, 0.0
        %v1359 = vsub.f32 0.0, %v1355
        %v1360 = vsub.f32 0.0, %v1356
        %v1361 = vsel %vm1357, %v1355, %v1359
        %v1362 = vsel %vm1358, %v1356, %v1360
        %v1363 = vadd.f32 %v1361, 1.0
        %v1364 = vadd.f32 %v1362, 1.0
        %v1365 = vmul.f32 %v1287, %v1363
        %v1366 = vmul.f32 %v1288, %v1364
        %v1367 = vpack.c.bf16 %v1365, %v1365
        %v1368 = vpack.c.bf16 %v1366, %v1366
        %v1369 = vld [vmem:[#allocation13] sm:$0xf]
        %v1370 = vld [vmem:[#allocation13 + $0x4] sm:$0xf]
        %v1371 = vld [vmem:[#allocation13 + $0x8] sm:$0xf]
        %v1372 = vld [vmem:[#allocation13 + $0xc] sm:$0xf]
        %v1373 = vld [vmem:[#allocation13 + $0x10] sm:$0xf]
        %v1374 = vld [vmem:[#allocation13 + $0x14] sm:$0xf]
        %v1375 = vld [vmem:[#allocation13 + $0x18] sm:$0xf]
        %v1376 = vld [vmem:[#allocation13 + $0x1c] sm:$0xf]
        %v1377 = vld [vmem:[#allocation13 + $0x20] sm:$0xf]
        %v1378 = vld [vmem:[#allocation13 + $0x24] sm:$0xf]
        %v1379 = vld [vmem:[#allocation13 + $0x28] sm:$0xf]
        %v1380 = vld [vmem:[#allocation13 + $0x2c] sm:$0xf]
        %v1381 = vld [vmem:[#allocation13 + $0x30] sm:$0xf]
        %v1382 = vld [vmem:[#allocation13 + $0x34] sm:$0xf]
        %v1383 = vld [vmem:[#allocation13 + $0x38] sm:$0xf]
        %v1384 = vld [vmem:[#allocation13 + $0x3c] sm:$0xf]
        %v1385 = vld [vmem:[#allocation13 + $0x40] sm:$0xf]
        %v1386 = vld [vmem:[#allocation13 + $0x44] sm:$0xf]
        %v1387 = vld [vmem:[#allocation13 + $0x48] sm:$0xf]
        %v1388 = vld [vmem:[#allocation13 + $0x4c] sm:$0xf]
        %v1389 = vld [vmem:[#allocation13 + $0x50] sm:$0xf]
        %v1390 = vld [vmem:[#allocation13 + $0x54] sm:$0xf]
        %v1391 = vld [vmem:[#allocation13 + $0x58] sm:$0xf]
        %v1392 = vld [vmem:[#allocation13 + $0x5c] sm:$0xf]
        %v1393 = vld [vmem:[#allocation13 + $0x60] sm:$0xf]
        %v1394 = vld [vmem:[#allocation13 + $0x64] sm:$0xf]
        %v1395 = vld [vmem:[#allocation13 + $0x68] sm:$0xf]
        %v1396 = vld [vmem:[#allocation13 + $0x6c] sm:$0xf]
        %v1397 = vld [vmem:[#allocation13 + $0x70] sm:$0xf]
        %v1398 = vld [vmem:[#allocation13 + $0x74] sm:$0xf]
        %v1399 = vld [vmem:[#allocation13 + $0x78] sm:$0xf]
        %v1400 = vld [vmem:[#allocation13 + $0x7c] sm:$0xf]
        %v1401 = vld [vmem:[%s9] sm:$0x1]
        %v1403 = vperm.slane %v1401, 0
        %v1437 = vunpack.c.l.b16 %v1369
        %v1438 = vunpack.c.l.b16 %v1370
        %v1439 = vunpack.c.l.b16 %v1371
        %v1440 = vunpack.c.l.b16 %v1372
        %v1441 = vunpack.c.l.b16 %v1373
        %v1442 = vunpack.c.l.b16 %v1374
        %v1443 = vunpack.c.l.b16 %v1375
        %v1444 = vunpack.c.l.b16 %v1376
        %v1445 = vunpack.c.l.b16 %v1377
        %v1446 = vunpack.c.l.b16 %v1378
        %v1447 = vunpack.c.l.b16 %v1379
        %v1448 = vunpack.c.l.b16 %v1380
        %v1449 = vunpack.c.l.b16 %v1381
        %v1450 = vunpack.c.l.b16 %v1382
        %v1451 = vunpack.c.l.b16 %v1383
        %v1452 = vunpack.c.l.b16 %v1384
        %v1453 = vunpack.c.l.b16 %v1385
        %v1454 = vunpack.c.l.b16 %v1386
        %v1455 = vunpack.c.l.b16 %v1387
        %v1456 = vunpack.c.l.b16 %v1388
        %v1457 = vunpack.c.l.b16 %v1389
        %v1458 = vunpack.c.l.b16 %v1390
        %v1459 = vunpack.c.l.b16 %v1391
        %v1460 = vunpack.c.l.b16 %v1392
        %v1461 = vunpack.c.l.b16 %v1393
        %v1462 = vunpack.c.l.b16 %v1394
        %v1463 = vunpack.c.l.b16 %v1395
        %v1464 = vunpack.c.l.b16 %v1396
        %v1465 = vunpack.c.l.b16 %v1397
        %v1466 = vunpack.c.l.b16 %v1398
        %v1467 = vunpack.c.l.b16 %v1399
        %v1468 = vunpack.c.l.b16 %v1400
        %v1469 = vpack.c.b16 %v1438, %v1437
        %v1470 = vpack.c.b16 %v1440, %v1439
        %v1471 = vpack.c.b16 %v1442, %v1441
        %v1472 = vpack.c.b16 %v1444, %v1443
        %v1473 = vpack.c.b16 %v1446, %v1445
        %v1474 = vpack.c.b16 %v1448, %v1447
        %v1475 = vpack.c.b16 %v1450, %v1449
        %v1476 = vpack.c.b16 %v1452, %v1451
        %v1477 = vpack.c.b16 %v1454, %v1453
        %v1478 = vpack.c.b16 %v1456, %v1455
        %v1479 = vpack.c.b16 %v1458, %v1457
        %v1480 = vpack.c.b16 %v1460, %v1459
        %v1481 = vpack.c.b16 %v1462, %v1461
        %v1482 = vpack.c.b16 %v1464, %v1463
        %v1483 = vpack.c.b16 %v1466, %v1465
        %v1484 = vpack.c.b16 %v1468, %v1467
        %1501 = vmatpush.bf16.msra.mxu0 %v1476
        %1502 = vmatpush.bf16.msra.mxu0 %v1475
        %1503 = vmatpush.bf16.msra.mxu0 %v1474
        %1504 = vmatpush.bf16.msra.mxu0 %v1473
        %1505 = vmatpush.bf16.msra.mxu0 %v1472
        %1506 = vmatpush.bf16.msra.mxu0 %v1471
        %1507 = vmatpush.bf16.msra.mxu0 %v1470
        %1508 = vmatpush.bf16.msra.mxu0 %v1469
        %1509 = vmatmul.bf16.gmra.mxu0 %v1367
        %v1510 = vpop.f32.mrf.mxu0
        %v1511 = vadd.f32 %v1403, %v1510
        %v1512 = vpop.f32.mrf.mxu0
        %1513 = vdwg.mxu0
        %1514 = vmatpush.bf16.msra.mxu0 %v1484
        %1515 = vmatpush.bf16.msra.mxu0 %v1483
        %1516 = vmatpush.bf16.msra.mxu0 %v1482
        %1517 = vmatpush.bf16.msra.mxu0 %v1481
        %1518 = vmatpush.bf16.msra.mxu0 %v1480
        %1519 = vmatpush.bf16.msra.mxu0 %v1479
        %1520 = vmatpush.bf16.msra.mxu0 %v1478
        %1521 = vmatpush.bf16.msra.mxu0 %v1477
        %1522 = vmatmul.bf16.gmra.mxu0 %v1368
        %v1523 = vpop.f32.mrf.mxu0
        %v1524 = vadd.f32 %v1511, %v1523
        %v1525 = vpop.f32.mrf.mxu0
        %1526 = vdwg.mxu0
        %v1527 = vld [vmem:[%s10] sm:$0x1]
        %v1528 = vld [vmem:[%s11] sm:$0x1]
        %1529 = vadd.xlane.f32.xlu0 %v1524
        %v1530 = vpop.xlane.xlu0 %1529
        %v1531 = vrcp.pop 128.0
        %v1532 = vmul.f32 128.0, %v1531
        %v1533 = vsub.f32 1.0, %v1532
        %v1534 = vmul.f32 %v1531, %v1533
        %v1535 = vadd.f32 %v1531, %v1534
        %vm1536 = vweird.f32 %v1531
        %v1537 = vsel %vm1536, %v1531, %v1535
        %v1538 = vmul.f32 %v1530, %v1537
        %v1539 = vsub.f32 %v1524, %v1538
        %v1540 = vmul.f32 %v1539, %v1539
        %1541 = vadd.xlane.f32.xlu0 %v1540
        %v1542 = vpop.xlane.xlu0 %1541
        %v1543 = vmul.f32 %v1542, %v1537
        %v1544 = vadd.f32 %v1543, 1e-05
        %v1545 = vrsqrt.pop %v1544
        %v1546 = vmul.f32 %v1545, %v1544
        %v1547 = vmul.f32 %v1546, %v1545
        %v1548 = vmul.f32 0.5, %v1547
        %v1549 = vsub.f32 1.5, %v1548
        %v1550 = vmul.f32 %v1545, %v1549
        %vm1551 = vweird.f32 %v1544
        %vm1552 = vweird.f32 %v1545
        %vm1553 = vmor %vm1551, %vm1552
        %v1554 = vsel %vm1553, %v1545, %v1550
        %v1555 = vmul.f32 %v1539, %v1554
        %v1557 = vperm.slane %v1527, 0
        %v1559 = vmul.f32 %v1555, %v1557
        %v1561 = vperm.slane %v1528, 0
        %v1563 = vadd.f32 %v1559, %v1561
        %v1564 = vpack.c.bf16 %v1563, %v1563
        %v1565 = vld [vmem:[#allocation15] sm:$0xff]
        %v1566 = vld [vmem:[#allocation15 + $0x8] sm:$0xf]
        %v1567 = vld [vmem:[#allocation15 + $0xc] sm:$0xff]
        %v1568 = vld [vmem:[#allocation15 + $0x14] sm:$0xf]
        %v1569 = vld [vmem:[#allocation15 + $0x18] sm:$0xff]
        %v1570 = vld [vmem:[#allocation15 + $0x20] sm:$0xf]
        %v1571 = vld [vmem:[#allocation15 + $0x24] sm:$0xff]
        %v1572 = vld [vmem:[#allocation15 + $0x2c] sm:$0xf]
        %v1573 = vld [vmem:[#allocation15 + $0x30] sm:$0xff]
        %v1574 = vld [vmem:[#allocation15 + $0x38] sm:$0xf]
        %v1575 = vld [vmem:[#allocation15 + $0x3c] sm:$0xff]
        %v1576 = vld [vmem:[#allocation15 + $0x44] sm:$0xf]
        %v1577 = vld [vmem:[#allocation15 + $0x48] sm:$0xff]
        %v1578 = vld [vmem:[#allocation15 + $0x50] sm:$0xf]
        %v1579 = vld [vmem:[#allocation15 + $0x54] sm:$0xff]
        %v1580 = vld [vmem:[#allocation15 + $0x5c] sm:$0xf]
        %v1581 = vld [vmem:[#allocation15 + $0x60] sm:$0xff]
        %v1582 = vld [vmem:[#allocation15 + $0x68] sm:$0xf]
        %v1583 = vld [vmem:[#allocation15 + $0x6c] sm:$0xff]
        %v1584 = vld [vmem:[#allocation15 + $0x74] sm:$0xf]
        %v1585 = vld [vmem:[#allocation15 + $0x78] sm:$0xff]
        %v1586 = vld [vmem:[#allocation15 + $0x80] sm:$0xf]
        %v1587 = vld [vmem:[#allocation15 + $0x84] sm:$0xff]
        %v1588 = vld [vmem:[#allocation15 + $0x8c] sm:$0xf]
        %v1589 = vld [vmem:[#allocation15 + $0x90] sm:$0xff]
        %v1590 = vld [vmem:[#allocation15 + $0x98] sm:$0xf]
        %v1591 = vld [vmem:[#allocation15 + $0x9c] sm:$0xff]
        %v1592 = vld [vmem:[#allocation15 + $0xa4] sm:$0xf]
        %v1593 = vld [vmem:[#allocation15 + $0xa8] sm:$0xff]
        %v1594 = vld [vmem:[#allocation15 + $0xb0] sm:$0xf]
        %v1595 = vld [vmem:[#allocation15 + $0xb4] sm:$0xff]
        %v1596 = vld [vmem:[#allocation15 + $0xbc] sm:$0xf]
        %v1597 = vld [vmem:[%s13] sm:$0x7]
        %v1599 = vperm.slane %v1597, 0
        %v1600 = vperm.slane %v1597, 1
        %v1601 = vperm.slane %v1597, 2
        %v1637 = vunpack.c.l.b16 %v1565
        %v1638 = vunpack.c.h.b16 %v1565
        %v1639 = vunpack.c.l.b16 %v1566
        %v1640 = vunpack.c.l.b16 %v1567
        %v1641 = vunpack.c.h.b16 %v1567
        %v1642 = vunpack.c.l.b16 %v1568
        %v1643 = vunpack.c.l.b16 %v1569
        %v1644 = vunpack.c.h.b16 %v1569
        %v1645 = vunpack.c.l.b16 %v1570
        %v1646 = vunpack.c.l.b16 %v1571
        %v1647 = vunpack.c.h.b16 %v1571
        %v1648 = vunpack.c.l.b16 %v1572
        %v1649 = vunpack.c.l.b16 %v1573
        %v1650 = vunpack.c.h.b16 %v1573
        %v1651 = vunpack.c.l.b16 %v1574
        %v1652 = vunpack.c.l.b16 %v1575
        %v1653 = vunpack.c.h.b16 %v1575
        %v1654 = vunpack.c.l.b16 %v1576
        %v1655 = vunpack.c.l.b16 %v1577
        %v1656 = vunpack.c.h.b16 %v1577
        %v1657 = vunpack.c.l.b16 %v1578
        %v1658 = vunpack.c.l.b16 %v1579
        %v1659 = vunpack.c.h.b16 %v1579
        %v1660 = vunpack.c.l.b16 %v1580
        %v1661 = vunpack.c.l.b16 %v1581
        %v1662 = vunpack.c.h.b16 %v1581
        %v1663 = vunpack.c.l.b16 %v1582
        %v1664 = vunpack.c.l.b16 %v1583
        %v1665 = vunpack.c.h.b16 %v1583
        %v1666 = vunpack.c.l.b16 %v1584
        %v1667 = vunpack.c.l.b16 %v1585
        %v1668 = vunpack.c.h.b16 %v1585
        %v1669 = vunpack.c.l.b16 %v1586
        %v1670 = vunpack.c.l.b16 %v1587
        %v1671 = vunpack.c.h.b16 %v1587
        %v1672 = vunpack.c.l.b16 %v1588
        %v1673 = vunpack.c.l.b16 %v1589
        %v1674 = vunpack.c.h.b16 %v1589
        %v1675 = vunpack.c.l.b16 %v1590
        %v1676 = vunpack.c.l.b16 %v1591
        %v1677 = vunpack.c.h.b16 %v1591
        %v1678 = vunpack.c.l.b16 %v1592
        %v1679 = vunpack.c.l.b16 %v1593
        %v1680 = vunpack.c.h.b16 %v1593
        %v1681 = vunpack.c.l.b16 %v1594
        %v1682 = vunpack.c.l.b16 %v1595
        %v1683 = vunpack.c.h.b16 %v1595
        %v1684 = vunpack.c.l.b16 %v1596
        %v1685 = vpack.c.b16 %v1640, %v1637
        %v1686 = vpack.c.b16 %v1641, %v1638
        %v1687 = vpack.c.b16 %v1642, %v1639
        %v1688 = vpack.c.b16 %v1646, %v1643
        %v1689 = vpack.c.b16 %v1647, %v1644
        %v1690 = vpack.c.b16 %v1648, %v1645
        %v1691 = vpack.c.b16 %v1652, %v1649
        %v1692 = vpack.c.b16 %v1653, %v1650
        %v1693 = vpack.c.b16 %v1654, %v1651
        %v1694 = vpack.c.b16 %v1658, %v1655
        %v1695 = vpack.c.b16 %v1659, %v1656
        %v1696 = vpack.c.b16 %v1660, %v1657
        %v1697 = vpack.c.b16 %v1664, %v1661
        %v1698 = vpack.c.b16 %v1665, %v1662
        %v1699 = vpack.c.b16 %v1666, %v1663
        %v1700 = vpack.c.b16 %v1670, %v1667
        %v1701 = vpack.c.b16 %v1671, %v1668
        %v1702 = vpack.c.b16 %v1672, %v1669
        %v1703 = vpack.c.b16 %v1676, %v1673
        %v1704 = vpack.c.b16 %v1677, %v1674
        %v1705 = vpack.c.b16 %v1678, %v1675
        %v1706 = vpack.c.b16 %v1682, %v1679
        %v1707 = vpack.c.b16 %v1683, %v1680
        %v1708 = vpack.c.b16 %v1684, %v1681
        %1733 = vmatpush.bf16.msra.mxu0 %v1706
        %1734 = vmatpush.bf16.msra.mxu0 %v1703
        %1735 = vmatpush.bf16.msra.mxu0 %v1700
        %1736 = vmatpush.bf16.msra.mxu0 %v1697
        %1737 = vmatpush.bf16.msra.mxu0 %v1694
        %1738 = vmatpush.bf16.msra.mxu0 %v1691
        %1739 = vmatpush.bf16.msra.mxu0 %v1688
        %1740 = vmatpush.bf16.msra.mxu0 %v1685
        %1741 = vmatmul.bf16.gmra.mxu0 %v1564
        %v1742 = vpop.f32.mrf.mxu0
        %v1743 = vadd.f32 %v1599, %v1742
        %v1744 = vpop.f32.mrf.mxu0
        %1745 = vdwg.mxu0
        %1746 = vmatpush.bf16.msra.mxu0 %v1707
        %1747 = vmatpush.bf16.msra.mxu0 %v1704
        %1748 = vmatpush.bf16.msra.mxu0 %v1701
        %1749 = vmatpush.bf16.msra.mxu0 %v1698
        %1750 = vmatpush.bf16.msra.mxu0 %v1695
        %1751 = vmatpush.bf16.msra.mxu0 %v1692
        %1752 = vmatpush.bf16.msra.mxu0 %v1689
        %1753 = vmatpush.bf16.msra.mxu0 %v1686
        %1754 = vmatmul.bf16.gmra.mxu0 %v1564
        %v1755 = vpop.f32.mrf.mxu0
        %v1756 = vadd.f32 %v1600, %v1755
        %v1757 = vpop.f32.mrf.mxu0
        %1758 = vdwg.mxu0
        %1759 = vmatpush.bf16.msra.mxu0 %v1708
        %1760 = vmatpush.bf16.msra.mxu0 %v1705
        %1761 = vmatpush.bf16.msra.mxu0 %v1702
        %1762 = vmatpush.bf16.msra.mxu0 %v1699
        %1763 = vmatpush.bf16.msra.mxu0 %v1696
        %1764 = vmatpush.bf16.msra.mxu0 %v1693
        %1765 = vmatpush.bf16.msra.mxu0 %v1690
        %1766 = vmatpush.bf16.msra.mxu0 %v1687
        %1767 = vmatmul.bf16.gmra.mxu0 %v1564
        %v1768 = vpop.f32.mrf.mxu0
        %v1769 = vadd.f32 %v1601, %v1768
        %v1770 = vpop.f32.mrf.mxu0
        %1771 = vdwg.mxu0
        %1772 = vst [vmem:[#allocation2] sm:$0xff] %v1743
        %1773 = vst [vmem:[#allocation2 + $0x8] sm:$0xff] %v1756
        %1774 = vst [vmem:[#allocation2 + $0x10] sm:$0xff] %v1769
        %v1775 = vlaneseq
        %v1776 = vshrl.u32 %v1775, 7
        %v1777 = vadd.s32 %v1776, 8
        %v1778 = vadd.s32 %v1776, 16
        %v1779 = vadd.s32 %v1776, 24
        %v1780 = vadd.s32 %v1776, 32
        %v1781 = vadd.s32 %v1776, 40
        %v1782 = vadd.s32 %v1776, 48
        %v1783 = vadd.s32 %v1776, 56
        %v1784 = vlaneseq
        %v1785 = vand.u32 %v1784, 127
        %vm1786 = vcmp.ge.s32.totalorder %v1776, 8
        %vm1787 = vcmp.ge.s32.totalorder %v1777, 8
        %vm1788 = vcmp.ge.s32.totalorder %v1778, 8
        %vm1789 = vcmp.ge.s32.totalorder %v1779, 8
        %vm1790 = vcmp.ge.s32.totalorder %v1780, 8
        %vm1791 = vcmp.ge.s32.totalorder %v1781, 8
        %vm1792 = vcmp.ge.s32.totalorder %v1782, 8
        %vm1793 = vcmp.ge.s32.totalorder %v1783, 8
        %v1794 = vsel %vm1786, 1, 0
        %v1795 = vsel %vm1787, 1, 0
        %v1796 = vsel %vm1788, 1, 0
        %v1797 = vsel %vm1789, 1, 0
        %v1798 = vsel %vm1790, 1, 0
        %v1799 = vsel %vm1791, 1, 0
        %v1800 = vsel %vm1792, 1, 0
        %v1801 = vsel %vm1793, 1, 0
        %vm1802 = vcmp.ge.s32.totalorder %v1785, 16
        %v1803 = vsel %vm1802, 1, 0
        %vm1804 = vcmp.ge.s32.totalorder %v1776, 16
        %vm1805 = vcmp.ge.s32.totalorder %v1777, 16
        %vm1806 = vcmp.ge.s32.totalorder %v1778, 16
        %vm1807 = vcmp.ge.s32.totalorder %v1779, 16
        %vm1808 = vcmp.ge.s32.totalorder %v1780, 16
        %vm1809 = vcmp.ge.s32.totalorder %v1781, 16
        %vm1810 = vcmp.ge.s32.totalorder %v1782, 16
        %vm1811 = vcmp.ge.s32.totalorder %v1783, 16
        %v1812 = vsel %vm1804, 1, 0
        %v1813 = vsel %vm1805, 1, 0
        %v1814 = vsel %vm1806, 1, 0
        %v1815 = vsel %vm1807, 1, 0
        %v1816 = vsel %vm1808, 1, 0
        %v1817 = vsel %vm1809, 1, 0
        %v1818 = vsel %vm1810, 1, 0
        %v1819 = vsel %vm1811, 1, 0
        %v1820 = vadd.s32 %v1794, %v1812
        %v1821 = vadd.s32 %v1795, %v1813
        %v1822 = vadd.s32 %v1796, %v1814
        %v1823 = vadd.s32 %v1797, %v1815
        %v1824 = vadd.s32 %v1798, %v1816
        %v1825 = vadd.s32 %v1799, %v1817
        %v1826 = vadd.s32 %v1800, %v1818
        %v1827 = vadd.s32 %v1801, %v1819
        %vm1828 = vcmp.ge.s32.totalorder %v1785, 32
        %v1829 = vsel %vm1828, 1, 0
        %v1830 = vadd.s32 %v1803, %v1829
        %vm1831 = vcmp.ge.s32.totalorder %v1776, 24
        %vm1832 = vcmp.ge.s32.totalorder %v1777, 24
        %vm1833 = vcmp.ge.s32.totalorder %v1778, 24
        %vm1834 = vcmp.ge.s32.totalorder %v1779, 24
        %vm1835 = vcmp.ge.s32.totalorder %v1780, 24
        %vm1836 = vcmp.ge.s32.totalorder %v1781, 24
        %vm1837 = vcmp.ge.s32.totalorder %v1782, 24
        %vm1838 = vcmp.ge.s32.totalorder %v1783, 24
        %v1839 = vsel %vm1831, 1, 0
        %v1840 = vsel %vm1832, 1, 0
        %v1841 = vsel %vm1833, 1, 0
        %v1842 = vsel %vm1834, 1, 0
        %v1843 = vsel %vm1835, 1, 0
        %v1844 = vsel %vm1836, 1, 0
        %v1845 = vsel %vm1837, 1, 0
        %v1846 = vsel %vm1838, 1, 0
        %v1847 = vadd.s32 %v1820, %v1839
        %v1848 = vadd.s32 %v1821, %v1840
        %v1849 = vadd.s32 %v1822, %v1841
        %v1850 = vadd.s32 %v1823, %v1842
        %v1851 = vadd.s32 %v1824, %v1843
        %v1852 = vadd.s32 %v1825, %v1844
        %v1853 = vadd.s32 %v1826, %v1845
        %v1854 = vadd.s32 %v1827, %v1846
        %vm1855 = vcmp.ge.s32.totalorder %v1785, 48
        %v1856 = vsel %vm1855, 1, 0
        %v1857 = vadd.s32 %v1830, %v1856
        %vm1858 = vcmp.ge.s32.totalorder %v1776, 32
        %vm1859 = vcmp.ge.s32.totalorder %v1777, 32
        %vm1860 = vcmp.ge.s32.totalorder %v1778, 32
        %vm1861 = vcmp.ge.s32.totalorder %v1779, 32
        %vm1862 = vcmp.ge.s32.totalorder %v1780, 32
        %vm1863 = vcmp.ge.s32.totalorder %v1781, 32
        %vm1864 = vcmp.ge.s32.totalorder %v1782, 32
        %vm1865 = vcmp.ge.s32.totalorder %v1783, 32
        %v1866 = vsel %vm1858, 1, 0
        %v1867 = vsel %vm1859, 1, 0
        %v1868 = vsel %vm1860, 1, 0
        %v1869 = vsel %vm1861, 1, 0
        %v1870 = vsel %vm1862, 1, 0
        %v1871 = vsel %vm1863, 1, 0
        %v1872 = vsel %vm1864, 1, 0
        %v1873 = vsel %vm1865, 1, 0
        %v1874 = vadd.s32 %v1847, %v1866
        %v1875 = vadd.s32 %v1848, %v1867
        %v1876 = vadd.s32 %v1849, %v1868
        %v1877 = vadd.s32 %v1850, %v1869
        %v1878 = vadd.s32 %v1851, %v1870
        %v1879 = vadd.s32 %v1852, %v1871
        %v1880 = vadd.s32 %v1853, %v1872
        %v1881 = vadd.s32 %v1854, %v1873
        %vm1882 = vcmp.ge.s32.totalorder %v1785, 64
        %v1883 = vsel %vm1882, 1, 0
        %v1884 = vadd.s32 %v1857, %v1883
        %vm1885 = vcmp.ge.s32.totalorder %v1776, 40
        %vm1886 = vcmp.ge.s32.totalorder %v1777, 40
        %vm1887 = vcmp.ge.s32.totalorder %v1778, 40
        %vm1888 = vcmp.ge.s32.totalorder %v1779, 40
        %vm1889 = vcmp.ge.s32.totalorder %v1780, 40
        %vm1890 = vcmp.ge.s32.totalorder %v1781, 40
        %vm1891 = vcmp.ge.s32.totalorder %v1782, 40
        %vm1892 = vcmp.ge.s32.totalorder %v1783, 40
        %v1893 = vsel %vm1885, 1, 0
        %v1894 = vsel %vm1886, 1, 0
        %v1895 = vsel %vm1887, 1, 0
        %v1896 = vsel %vm1888, 1, 0
        %v1897 = vsel %vm1889, 1, 0
        %v1898 = vsel %vm1890, 1, 0
        %v1899 = vsel %vm1891, 1, 0
        %v1900 = vsel %vm1892, 1, 0
        %v1901 = vadd.s32 %v1874, %v1893
        %v1902 = vadd.s32 %v1875, %v1894
        %v1903 = vadd.s32 %v1876, %v1895
        %v1904 = vadd.s32 %v1877, %v1896
        %v1905 = vadd.s32 %v1878, %v1897
        %v1906 = vadd.s32 %v1879, %v1898
        %v1907 = vadd.s32 %v1880, %v1899
        %v1908 = vadd.s32 %v1881, %v1900
        %vm1909 = vcmp.ge.s32.totalorder %v1785, 80
        %v1910 = vsel %vm1909, 1, 0
        %v1911 = vadd.s32 %v1884, %v1910
        %vm1912 = vcmp.ge.s32.totalorder %v1776, 48
        %vm1913 = vcmp.ge.s32.totalorder %v1777, 48
        %vm1914 = vcmp.ge.s32.totalorder %v1778, 48
        %vm1915 = vcmp.ge.s32.totalorder %v1779, 48
        %vm1916 = vcmp.ge.s32.totalorder %v1780, 48
        %vm1917 = vcmp.ge.s32.totalorder %v1781, 48
        %vm1918 = vcmp.ge.s32.totalorder %v1782, 48
        %vm1919 = vcmp.ge.s32.totalorder %v1783, 48
        %v1920 = vsel %vm1912, 1, 0
        %v1921 = vsel %vm1913, 1, 0
        %v1922 = vsel %vm1914, 1, 0
        %v1923 = vsel %vm1915, 1, 0
        %v1924 = vsel %vm1916, 1, 0
        %v1925 = vsel %vm1917, 1, 0
        %v1926 = vsel %vm1918, 1, 0
        %v1927 = vsel %vm1919, 1, 0
        %v1928 = vadd.s32 %v1901, %v1920
        %v1929 = vadd.s32 %v1902, %v1921
        %v1930 = vadd.s32 %v1903, %v1922
        %v1931 = vadd.s32 %v1904, %v1923
        %v1932 = vadd.s32 %v1905, %v1924
        %v1933 = vadd.s32 %v1906, %v1925
        %v1934 = vadd.s32 %v1907, %v1926
        %v1935 = vadd.s32 %v1908, %v1927
        %vm1936 = vcmp.ge.s32.totalorder %v1785, 96
        %v1937 = vsel %vm1936, 1, 0
        %v1938 = vadd.s32 %v1911, %v1937
        %vm1939 = vcmp.ge.s32.totalorder %v1776, 56
        %vm1940 = vcmp.ge.s32.totalorder %v1777, 56
        %vm1941 = vcmp.ge.s32.totalorder %v1778, 56
        %vm1942 = vcmp.ge.s32.totalorder %v1779, 56
        %vm1943 = vcmp.ge.s32.totalorder %v1780, 56
        %vm1944 = vcmp.ge.s32.totalorder %v1781, 56
        %vm1945 = vcmp.ge.s32.totalorder %v1782, 56
        %vm1946 = vcmp.ge.s32.totalorder %v1783, 56
        %v1947 = vsel %vm1939, 1, 0
        %v1948 = vsel %vm1940, 1, 0
        %v1949 = vsel %vm1941, 1, 0
        %v1950 = vsel %vm1942, 1, 0
        %v1951 = vsel %vm1943, 1, 0
        %v1952 = vsel %vm1944, 1, 0
        %v1953 = vsel %vm1945, 1, 0
        %v1954 = vsel %vm1946, 1, 0
        %v1955 = vadd.s32 %v1928, %v1947
        %v1956 = vadd.s32 %v1929, %v1948
        %v1957 = vadd.s32 %v1930, %v1949
        %v1958 = vadd.s32 %v1931, %v1950
        %v1959 = vadd.s32 %v1932, %v1951
        %v1960 = vadd.s32 %v1933, %v1952
        %v1961 = vadd.s32 %v1934, %v1953
        %v1962 = vadd.s32 %v1935, %v1954
        %vm1963 = vcmp.ge.s32.totalorder %v1785, 112
        %v1964 = vsel %vm1963, 1, 0
        %v1965 = vadd.s32 %v1938, %v1964
        %vm1966 = vcmp.eq.s32.totalorder %v1955, %v1965
        %vm1967 = vcmp.eq.s32.totalorder %v1956, %v1965
        %vm1968 = vcmp.eq.s32.totalorder %v1957, %v1965
        %vm1969 = vcmp.eq.s32.totalorder %v1958, %v1965
        %vm1970 = vcmp.eq.s32.totalorder %v1959, %v1965
        %vm1971 = vcmp.eq.s32.totalorder %v1960, %v1965
        %vm1972 = vcmp.eq.s32.totalorder %v1961, %v1965
        %vm1973 = vcmp.eq.s32.totalorder %v1962, %v1965
        %v1974 = vsel %vm1966, 1, 0
        %v1975 = vsel %vm1967, 1, 0
        %v1976 = vsel %vm1968, 1, 0
        %v1977 = vsel %vm1969, 1, 0
        %v1978 = vsel %vm1970, 1, 0
        %v1979 = vsel %vm1971, 1, 0
        %v1980 = vsel %vm1972, 1, 0
        %v1981 = vsel %vm1973, 1, 0
        %v1982 = vcvt.s32.f32 %v1974
        %v1983 = vcvt.s32.f32 %v1975
        %v1984 = vcvt.s32.f32 %v1976
        %v1985 = vcvt.s32.f32 %v1977
        %v1986 = vcvt.s32.f32 %v1978
        %v1987 = vcvt.s32.f32 %v1979
        %v1988 = vcvt.s32.f32 %v1980
        %v1989 = vcvt.s32.f32 %v1981
        %s1990 = smul.u32 0, 3
        %s1991 = smul.addr %s1990, 8
        %s1992 = scalar_lea.vmem [#allocation2], %s1991
        %v1993 = vld [vmem:[%s1992] sm:$0xff]
        %v1994 = vld [vmem:[%s1992 + $0x8] sm:$0xff]
        %v1995 = vld [vmem:[%s1992 + $0x10] sm:$0xff]
        %v1996 = vmul.f32 %v1993, %v1982
        %v1997 = vmul.f32 %v1993, %v1983
        %v1998 = vmul.f32 %v1993, %v1984
        %v1999 = vmul.f32 %v1993, %v1985
        %v2000 = vmul.f32 %v1993, %v1986
        %v2001 = vmul.f32 %v1993, %v1987
        %v2002 = vmul.f32 %v1993, %v1988
        %v2003 = vmul.f32 %v1993, %v1989
        %2004 = vmatpush.xpose.msra.mxu0 0.0
        %2005 = vmatpush.xpose.msra.mxu0 0.0
        %2006 = vmatpush.xpose.msra.mxu0 0.0
        %2007 = vmatpush.xpose.msra.mxu0 0.0
        %2008 = vmatpush.xpose.msra.mxu0 0.0
        %2009 = vmatpush.xpose.msra.mxu0 0.0
        %2010 = vmatpush.xpose.msra.mxu0 0.0
        %2011 = vmatpush.xpose.msra.mxu0 0.0
        %2012 = vmatpush.xpose.msra.mxu0 0.0
        %2013 = vmatpush.xpose.msra.mxu0 0.0
        %2014 = vmatpush.xpose.msra.mxu0 0.0
        %2015 = vmatpush.xpose.msra.mxu0 0.0
        %2016 = vmatpush.xpose.msra.mxu0 0.0
        %2017 = vmatpush.xpose.msra.mxu0 0.0
        %2018 = vmatpush.xpose.msra.mxu0 0.0
        %2019 = vmatpush.xpose.msra.mxu0 %v1994
        %2020 = vmatmul.f32.gmra.mxu0 %v1996
        %v2021 = vpop.f32.mrf.mxu0
        %v2022 = vadd.f32 0.0, %v2021
        %2023 = vmatmul.f32.gmra.mxu0 %v1997
        %v2024 = vpop.f32.mrf.mxu0
        %v2025 = vadd.f32 0.0, %v2024
        %2026 = vmatmul.f32.gmra.mxu0 %v1998
        %v2027 = vpop.f32.mrf.mxu0
        %v2028 = vadd.f32 0.0, %v2027
        %2029 = vmatmul.f32.gmra.mxu0 %v1999
        %v2030 = vpop.f32.mrf.mxu0
        %v2031 = vadd.f32 0.0, %v2030
        %2032 = vmatmul.f32.gmra.mxu0 %v2000
        %v2033 = vpop.f32.mrf.mxu0
        %v2034 = vadd.f32 0.0, %v2033
        %2035 = vmatmul.f32.gmra.mxu0 %v2001
        %v2036 = vpop.f32.mrf.mxu0
        %v2037 = vadd.f32 0.0, %v2036
        %2038 = vmatmul.f32.gmra.mxu0 %v2002
        %v2039 = vpop.f32.mrf.mxu0
        %v2040 = vadd.f32 0.0, %v2039
        %2041 = vmatmul.f32.gmra.mxu0 %v2003
        %v2042 = vpop.f32.mrf.mxu0
        %v2043 = vadd.f32 0.0, %v2042
        %2044 = vdwg.mxu0
        %v2045 = vmul.f32 %v2022, 0.25
        %v2046 = vmul.f32 %v2025, 0.25
        %v2047 = vmul.f32 %v2028, 0.25
        %v2048 = vmul.f32 %v2031, 0.25
        %v2049 = vmul.f32 %v2034, 0.25
        %v2050 = vmul.f32 %v2037, 0.25
        %v2051 = vmul.f32 %v2040, 0.25
        %v2052 = vmul.f32 %v2043, 0.25
        %v2053 = vsel %vm654, %v2045, -inf
        %2054 = vmax.xlane.f32.xlu0 %v2053
        %v2055 = vpop.xlane.xlu0 %2054
        %v2056 = vsel %vm654, %v2046, -inf
        %2057 = vmax.xlane.f32.xlu0 %v2056
        %v2058 = vpop.xlane.xlu0 %2057
        %v2059 = vsel %vm654, %v2047, -inf
        %2060 = vmax.xlane.f32.xlu0 %v2059
        %v2061 = vpop.xlane.xlu0 %2060
        %v2062 = vsel %vm654, %v2048, -inf
        %2063 = vmax.xlane.f32.xlu0 %v2062
        %v2064 = vpop.xlane.xlu0 %2063
        %v2065 = vsel %vm654, %v2049, -inf
        %2066 = vmax.xlane.f32.xlu0 %v2065
        %v2067 = vpop.xlane.xlu0 %2066
        %v2068 = vsel %vm654, %v2050, -inf
        %2069 = vmax.xlane.f32.xlu0 %v2068
        %v2070 = vpop.xlane.xlu0 %2069
        %v2071 = vsel %vm654, %v2051, -inf
        %2072 = vmax.xlane.f32.xlu0 %v2071
        %v2073 = vpop.xlane.xlu0 %2072
        %v2074 = vsel %vm654, %v2052, -inf
        %2075 = vmax.xlane.f32.xlu0 %v2074
        %v2076 = vpop.xlane.xlu0 %2075
        %v2077 = vsub.f32 %v2045, %v2055
        %v2078 = vsub.f32 %v2046, %v2058
        %v2079 = vsub.f32 %v2047, %v2061
        %v2080 = vsub.f32 %v2048, %v2064
        %v2081 = vsub.f32 %v2049, %v2067
        %v2082 = vsub.f32 %v2050, %v2070
        %v2083 = vsub.f32 %v2051, %v2073
        %v2084 = vsub.f32 %v2052, %v2076
        %v2085 = vmul.f32 %v2077, 1.442695
        %v2086 = vpow.pop %v2085
        %v2087 = vmul.f32 %v2078, 1.442695
        %v2088 = vpow.pop %v2087
        %v2089 = vmul.f32 %v2079, 1.442695
        %v2090 = vpow.pop %v2089
        %v2091 = vmul.f32 %v2080, 1.442695
        %v2092 = vpow.pop %v2091
        %v2093 = vmul.f32 %v2081, 1.442695
        %v2094 = vpow.pop %v2093
        %v2095 = vmul.f32 %v2082, 1.442695
        %v2096 = vpow.pop %v2095
        %v2097 = vmul.f32 %v2083, 1.442695
        %v2098 = vpow.pop %v2097
        %v2099 = vmul.f32 %v2084, 1.442695
        %v2100 = vpow.pop %v2099
        %v2101 = vsel %vm654, %v2086, 0.0
        %2102 = vadd.xlane.f32.xlu0 %v2101
        %v2103 = vpop.xlane.xlu0 %2102
        %v2104 = vsel %vm654, %v2088, 0.0
        %2105 = vadd.xlane.f32.xlu0 %v2104
        %v2106 = vpop.xlane.xlu0 %2105
        %v2107 = vsel %vm654, %v2090, 0.0
        %2108 = vadd.xlane.f32.xlu0 %v2107
        %v2109 = vpop.xlane.xlu0 %2108
        %v2110 = vsel %vm654, %v2092, 0.0
        %2111 = vadd.xlane.f32.xlu0 %v2110
        %v2112 = vpop.xlane.xlu0 %2111
        %v2113 = vsel %vm654, %v2094, 0.0
        %2114 = vadd.xlane.f32.xlu0 %v2113
        %v2115 = vpop.xlane.xlu0 %2114
        %v2116 = vsel %vm654, %v2096, 0.0
        %2117 = vadd.xlane.f32.xlu0 %v2116
        %v2118 = vpop.xlane.xlu0 %2117
        %v2119 = vsel %vm654, %v2098, 0.0
        %2120 = vadd.xlane.f32.xlu0 %v2119
        %v2121 = vpop.xlane.xlu0 %2120
        %v2122 = vsel %vm654, %v2100, 0.0
        %2123 = vadd.xlane.f32.xlu0 %v2122
        %v2124 = vpop.xlane.xlu0 %2123
        %v2125 = vrcp.pop %v2103
        %v2126 = vrcp.pop %v2106
        %v2127 = vrcp.pop %v2109
        %v2128 = vrcp.pop %v2112
        %v2129 = vrcp.pop %v2115
        %v2130 = vrcp.pop %v2118
        %v2131 = vrcp.pop %v2121
        %v2132 = vrcp.pop %v2124
        %v2133 = vmul.f32 %v2086, %v2125
        %v2134 = vmul.f32 %v2088, %v2126
        %v2135 = vmul.f32 %v2090, %v2127
        %v2136 = vmul.f32 %v2092, %v2128
        %v2137 = vmul.f32 %v2094, %v2129
        %v2138 = vmul.f32 %v2096, %v2130
        %v2139 = vmul.f32 %v2098, %v2131
        %v2140 = vmul.f32 %v2100, %v2132
        %v2142 = vsel %vm654, %v2133, 0
        %v2145 = vsel %vm654, %v2134, 0
        %v2148 = vsel %vm654, %v2135, 0
        %v2151 = vsel %vm654, %v2136, 0
        %v2154 = vsel %vm654, %v2137, 0
        %v2157 = vsel %vm654, %v2138, 0
        %v2160 = vsel %vm654, %v2139, 0
        %v2163 = vsel %vm654, %v2140, 0
        %2165 = vmatpush.msra.mxu0 0.0
        %2166 = vmatpush.msra.mxu0 0.0
        %2167 = vmatpush.msra.mxu0 0.0
        %2168 = vmatpush.msra.mxu0 0.0
        %2169 = vmatpush.msra.mxu0 0.0
        %2170 = vmatpush.msra.mxu0 0.0
        %2171 = vmatpush.msra.mxu0 0.0
        %2172 = vmatpush.msra.mxu0 0.0
        %2173 = vmatpush.msra.mxu0 0.0
        %2174 = vmatpush.msra.mxu0 0.0
        %2175 = vmatpush.msra.mxu0 0.0
        %2176 = vmatpush.msra.mxu0 0.0
        %2177 = vmatpush.msra.mxu0 0.0
        %2178 = vmatpush.msra.mxu0 0.0
        %2179 = vmatpush.msra.mxu0 0.0
        %2180 = vmatpush.msra.mxu0 %v1995
        %2181 = vmatmul.f32.gmra.mxu0 %v2142
        %v2182 = vpop.f32.mrf.mxu0
        %v2183 = vadd.f32 0.0, %v2182
        %2184 = vmatmul.f32.gmra.mxu0 %v2145
        %v2185 = vpop.f32.mrf.mxu0
        %v2186 = vadd.f32 0.0, %v2185
        %2187 = vmatmul.f32.gmra.mxu0 %v2148
        %v2188 = vpop.f32.mrf.mxu0
        %v2189 = vadd.f32 0.0, %v2188
        %2190 = vmatmul.f32.gmra.mxu0 %v2151
        %v2191 = vpop.f32.mrf.mxu0
        %v2192 = vadd.f32 0.0, %v2191
        %2193 = vmatmul.f32.gmra.mxu0 %v2154
        %v2194 = vpop.f32.mrf.mxu0
        %v2195 = vadd.f32 0.0, %v2194
        %2196 = vmatmul.f32.gmra.mxu0 %v2157
        %v2197 = vpop.f32.mrf.mxu0
        %v2198 = vadd.f32 0.0, %v2197
        %2199 = vmatmul.f32.gmra.mxu0 %v2160
        %v2200 = vpop.f32.mrf.mxu0
        %v2201 = vadd.f32 0.0, %v2200
        %2202 = vmatmul.f32.gmra.mxu0 %v2163
        %v2203 = vpop.f32.mrf.mxu0
        %v2204 = vadd.f32 0.0, %v2203
        %2205 = vdwg.mxu0
        %v2206 = vmul.f32 %v2183, %v1982
        %v2207 = vmul.f32 %v2186, %v1983
        %v2208 = vmul.f32 %v2189, %v1984
        %v2209 = vmul.f32 %v2192, %v1985
        %v2210 = vmul.f32 %v2195, %v1986
        %v2211 = vmul.f32 %v2198, %v1987
        %v2212 = vmul.f32 %v2201, %v1988
        %v2213 = vmul.f32 %v2204, %v1989
        %v2214 = vadd.f32 %v2206, %v2207
        %v2215 = vadd.f32 %v2214, %v2208
        %v2216 = vadd.f32 %v2215, %v2209
        %v2217 = vadd.f32 %v2216, %v2210
        %v2218 = vadd.f32 %v2217, %v2211
        %v2219 = vadd.f32 %v2218, %v2212
        %v2220 = vadd.f32 %v2219, %v2213
        %2221 = vst [vmem:[#allocation3] sm:$0xff] %v2220
        %v2222 = vld [vmem:[#allocation3] sm:$0xff]
        %v2223 = vpack.c.bf16 %v2222, %v2222
        %v2224 = vld [vmem:[#allocation16] sm:$0xf]
        %v2225 = vld [vmem:[#allocation16 + $0x4] sm:$0xf]
        %v2226 = vld [vmem:[#allocation16 + $0x8] sm:$0xf]
        %v2227 = vld [vmem:[#allocation16 + $0xc] sm:$0xf]
        %v2228 = vld [vmem:[#allocation16 + $0x10] sm:$0xf]
        %v2229 = vld [vmem:[#allocation16 + $0x14] sm:$0xf]
        %v2230 = vld [vmem:[#allocation16 + $0x18] sm:$0xf]
        %v2231 = vld [vmem:[#allocation16 + $0x1c] sm:$0xf]
        %v2232 = vld [vmem:[#allocation16 + $0x20] sm:$0xf]
        %v2233 = vld [vmem:[#allocation16 + $0x24] sm:$0xf]
        %v2234 = vld [vmem:[#allocation16 + $0x28] sm:$0xf]
        %v2235 = vld [vmem:[#allocation16 + $0x2c] sm:$0xf]
        %v2236 = vld [vmem:[#allocation16 + $0x30] sm:$0xf]
        %v2237 = vld [vmem:[#allocation16 + $0x34] sm:$0xf]
        %v2238 = vld [vmem:[#allocation16 + $0x38] sm:$0xf]
        %v2239 = vld [vmem:[#allocation16 + $0x3c] sm:$0xf]
        %v2240 = vld [vmem:[%s15] sm:$0x1]
        %v2242 = vperm.slane %v2240, 0
        %v2260 = vunpack.c.l.b16 %v2224
        %v2261 = vunpack.c.l.b16 %v2225
        %v2262 = vunpack.c.l.b16 %v2226
        %v2263 = vunpack.c.l.b16 %v2227
        %v2264 = vunpack.c.l.b16 %v2228
        %v2265 = vunpack.c.l.b16 %v2229
        %v2266 = vunpack.c.l.b16 %v2230
        %v2267 = vunpack.c.l.b16 %v2231
        %v2268 = vunpack.c.l.b16 %v2232
        %v2269 = vunpack.c.l.b16 %v2233
        %v2270 = vunpack.c.l.b16 %v2234
        %v2271 = vunpack.c.l.b16 %v2235
        %v2272 = vunpack.c.l.b16 %v2236
        %v2273 = vunpack.c.l.b16 %v2237
        %v2274 = vunpack.c.l.b16 %v2238
        %v2275 = vunpack.c.l.b16 %v2239
        %v2276 = vpack.c.b16 %v2261, %v2260
        %v2277 = vpack.c.b16 %v2263, %v2262
        %v2278 = vpack.c.b16 %v2265, %v2264
        %v2279 = vpack.c.b16 %v2267, %v2266
        %v2280 = vpack.c.b16 %v2269, %v2268
        %v2281 = vpack.c.b16 %v2271, %v2270
        %v2282 = vpack.c.b16 %v2273, %v2272
        %v2283 = vpack.c.b16 %v2275, %v2274
        %2292 = vmatpush.bf16.msra.mxu0 %v2283
        %2293 = vmatpush.bf16.msra.mxu0 %v2282
        %2294 = vmatpush.bf16.msra.mxu0 %v2281
        %2295 = vmatpush.bf16.msra.mxu0 %v2280
        %2296 = vmatpush.bf16.msra.mxu0 %v2279
        %2297 = vmatpush.bf16.msra.mxu0 %v2278
        %2298 = vmatpush.bf16.msra.mxu0 %v2277
        %2299 = vmatpush.bf16.msra.mxu0 %v2276
        %2300 = vmatmul.bf16.gmra.mxu0 %v2223
        %v2301 = vpop.f32.mrf.mxu0
        %v2302 = vadd.f32 %v2242, %v2301
        %v2303 = vpop.f32.mrf.mxu0
        %2304 = vdwg.mxu0
        %2305 = vst [vmem:[%s637] sm:$0xff] %v2302
        %s2306 = sand.u32 %s384, 1
        %s2307 = scalar_lea.sflag [#allocation6], %s2306
        %s2308 = sand.u32 %s384, 1
        %s2309 = smul.addr %s2308, 8
        %s2310 = scalar_lea.vmem [#allocation18], %s2309
        // Predicated region
        $region117: #{tpu_custom_call.1} parent=83 // pred_check
          %p2311 = pneg %p394
        $region118: #{tpu_custom_call.1} parent=83 // pred_check_branch
          %2313 = sbr.rel (%p2311) target = $region120
        $region119: #{tpu_custom_call.1} parent=83 // pred_region
          %2315 = vsyncadd %s2307, 0
          %s2316 = smul.addr %s35, 8
          %s2317 = scalar_lea.hbm %s16, %s2316
          %s2319 = sshll.u32 %s2310, 4
          %s2320 = int_to_ptr.vmem [resolvable:$true] %s2319
          %s2321 = sshll.u32 %s2317, 4
          %s2322 = int_to_ptr.hbm [resolvable:$true] %s2321
          %2324 = dma.vmem_to_hbm [thread:$0]  %s2320, 128, %s2322, %s2307
        $region120: #{tpu_custom_call.1} parent=83 // pred_fallthru
          _
      $region84: #{tpu_custom_call.1} parent=5 // pred_fallthru
        _
      %p2325 = scmp.le.s32.totalorder 2, %s30
      // Predicated region
      $region121: #{tpu_custom_call.1} parent=5 // pred_check
        %p2326 = pneg %p2325
      $region122: #{tpu_custom_call.1} parent=5 // pred_check_branch
        %2328 = sbr.rel (%p2326) target = $region124
      $region123: #{tpu_custom_call.1} parent=5 // pred_region
        %s2329 = ssub.s32 %s30, 2
        // Predicated region
        $region125: #{tpu_custom_call.1} parent=123 // pred_check
          %p2330 = pneg %p400
        $region126: #{tpu_custom_call.1} parent=123 // pred_check_branch
          %2332 = sbr.rel (%p2330) target = $region128
        $region127: #{tpu_custom_call.1} parent=123 // pred_region
          %s2333 = sand.u32 %s385, 1
          %s2334 = scalar_lea.sflag [#allocation6], %s2333
          %s2335 = sand.u32 %s385, 1
          %s2336 = smul.addr %s2335, 8
          %s2337 = scalar_lea.vmem [#allocation18], %s2336
          %2339 = dma.done %s2334, 128
        $region128: #{tpu_custom_call.1} parent=123 // pred_fallthru
          _
      $region124: #{tpu_custom_call.1} parent=5 // pred_fallthru
        _
    $region6: #{tpu_custom_call.1} parent=1 // loop_footer
      %s34 = sadd.s32 1, %s30
    $region7: #{tpu_custom_call.1} parent=1 // loop_footer_branch
      %29 = sbr.rel target = $region3
    $region8: #{tpu_custom_call.1} parent=1 // loop_exit
      _
    %2340 = vsyncpa [#allocation5], 1
    %s2341 = scalar_lea.sflag [#allocation5], 1
    %2342 = vsyncpa %s2341, 1
    %2343 = vsyncpa [#allocation8], 1
    %2344 = vsyncpa [#allocation11], 1
    %2345 = vsyncpa [#allocation14], 1
    %2346 = vsyncpa [#allocation17], 1
    %2347 = vsyncpa [#allocation6], 1
    %s2348 = scalar_lea.sflag [#allocation6], 1
    %2349 = vsyncpa %s2348, 1

</llo_original>
